<compile_context>
chip_gen: v7x
topology: tpu7x:2x2x1
jax: 0.10.0
libtpu: 0.0.40
codegen_flags: <defaults>
</compile_context>

<pallas_src>
import jax
import jax.numpy as jnp
from jax.experimental import pallas as pl
from jax.experimental.pallas import tpu as pltpu


def _round_up(x, m):
    return ((x + m - 1) // m) * m


# Operand order after the two activations; must match _mlp_kernel's signature.
_WEIGHT_KEYS = ("w1a", "w1b", "b1", "w2", "b2", "w3", "b3",
                "w4", "b4", "w5", "b5", "w6", "b6")


def _mlp_kernel(x1_ref, x2_ref,
                w1a_ref, w1b_ref, b1_ref,
                w2_ref, b2_ref,
                w3_ref, b3_ref,
                w4_ref, b4_ref,
                w5_ref, b5_ref,
                w6_ref, b6_ref,
                o_ref):
    """Fused 6-layer MLP on one [tm, :] batch tile (all matmuls on the MXU)."""

    def _linear(a, w_ref, b_ref):
        w = w_ref[...]
        acc = jnp.dot(a.astype(w.dtype), w, preferred_element_type=jnp.float32)
        return acc + b_ref[...].astype(jnp.float32)

    # fc1: cat([x1, x2]) @ W1 == x1 @ W1[:d1] + x2 @ W1[d1:]  (concat fused;
    # the weight split is done once at params-preparation time, not per call).
    w1a = w1a_ref[...]
    w1b = w1b_ref[...]
    h = (jnp.dot(x1_ref[...].astype(w1a.dtype), w1a,
                 preferred_element_type=jnp.float32)
         + jnp.dot(x2_ref[...].astype(w1b.dtype), w1b,
                   preferred_element_type=jnp.float32)
         + b1_ref[...].astype(jnp.float32))
    h = jnp.maximum(h, 0.0)                              # fc1 + relu (module's "tanh" IS ReLU)

    h = jnp.maximum(_linear(h, w2_ref, b2_ref), 0.0)     # fc2 + relu
    h = jnp.maximum(_linear(h, w3_ref, b3_ref), 0.0)     # fc3 + relu
    h = jnp.maximum(_linear(h, w4_ref, b4_ref), 0.0)     # fc4 + relu
    h = jnp.maximum(_linear(h, w5_ref, b5_ref), 0.0)     # fc5 + relu
    # fc6, no activation. Direct (tm, d_out) store (masked when d_out < 128),
    # avoiding a padded lane-dense buffer that would be re-read to slice.
    o_ref[...] = _linear(h, w6_ref, b6_ref).astype(o_ref.dtype)


def prepare_params(raw_params, dim1):
    """One-time weight preprocessing (hoisted out of the per-call hot path).

    Splits fc1's [dim1+dim2, 2*dim3] weight into the x1 / x2 halves so the
    wrapper-level concat is fused into two MXU dots with no extra HBM traffic.
    Accepts either a raw dict (w1..w6, b1..b6) or an already-prepared one.
    """
    if "w1a" in raw_params:
        return dict(raw_params)
    p = {k: v for k, v in raw_params.items() if k != "w1"}
    w1 = raw_params["w1"]
    p["w1a"] = w1[:dim1]
    p["w1b"] = w1[dim1:]
    return p


def _weight_spec(shape, single_buffer):
    # Resident weights never change across the batch grid; single-buffering
    # them halves their VMEM footprint vs the default double-buffered pipeline.
    if single_buffer and hasattr(pl, "Buffered"):
        return pl.BlockSpec(shape, lambda i: (0, 0), pipeline_mode=pl.Buffered(1))
    return pl.BlockSpec(shape, lambda i: (0, 0))


def _choose_tile(batch, block_rows):
    """Batch tile: guarantee >= 2 grid steps whenever the batch is big enough,
    so the "parallel" axis actually shards across both TensorCores (v7x)."""
    if batch <= 16:
        return batch                       # single tiny tile; nothing to split
    if batch <= block_rows:
        return min(block_rows, _round_up(pl.cdiv(batch, 2), 8))
    return max(8, (block_rows // 8) * 8)   # sweep block_rows in {256,512,1024}


def _build_call(x1, x2, params, tm, out_dtype, single_buffer_weights):
    B, d1 = x1.shape
    _, d2 = x2.shape
    d_out = int(params["w6"].shape[1])
    grid = (pl.cdiv(B, tm),)

    operands = [x1, x2] + [params[k] for k in _WEIGHT_KEYS]
    in_specs = [pl.BlockSpec((tm, d1), lambda i: (i, 0)),
                pl.BlockSpec((tm, d2), lambda i: (i, 0))]
    in_specs += [_weight_spec(params[k].shape, single_buffer_weights)
                 for k in _WEIGHT_KEYS]

    # Advisory cost estimate so XLA can overlap neighbors around the call.
    flops = 2 * B * sum(int(params[k].shape[0]) * int(params[k].shape[1])
                        for k in _WEIGHT_KEYS if k.startswith("w"))
    param_bytes = sum(int(params[k].size) * params[k].dtype.itemsize
                      for k in _WEIGHT_KEYS)
    out_itemsize = jnp.dtype(out_dtype).itemsize
    bytes_accessed = (x1.size * x1.dtype.itemsize + x2.size * x2.dtype.itemsize
                      + param_bytes + B * d_out * out_itemsize)
    cost = pl.CostEstimate(flops=flops, transcendentals=0,
                           bytes_accessed=bytes_accessed)

    # VMEM budget: double-buffered x/out tiles + (single|double)-buffered
    # resident weights + worst-case live f32 intermediates, with headroom,
    # clamped to what the smallest-VMEM chip (v7x, 64 MiB) can take and never
    # below 32 MiB (covers internal scratch; raises v5e's 16 MiB default).
    layer_widths = ([int(params["w1a"].shape[1])]
                    + [int(params[f"w{i}"].shape[1]) for i in range(2, 7)])
    act_bytes = 4 * tm * sum(layer_widths)
    wbuf = (1 if single_buffer_weights else 2) * param_bytes
    xbuf = 2 * tm * (d1 * x1.dtype.itemsize + d2 * x2.dtype.itemsize)
    obuf = 2 * tm * d_out * out_itemsize
    vmem_est = int(1.5 * (xbuf + obuf + wbuf + act_bytes))
    vmem_limit = int(min(max(vmem_est, 32 << 20), 64 << 20))

    call = pl.pallas_call(
        _mlp_kernel,
        grid=grid,
        in_specs=in_specs,
        out_specs=pl.BlockSpec((tm, d_out), lambda i: (i, 0)),
        out_shape=jax.ShapeDtypeStruct((B, d_out), out_dtype),
        compiler_params=pltpu.CompilerParams(
            dimension_semantics=("parallel",),       # shard batch tiles across TCs
            vmem_limit_bytes=vmem_limit),
        cost_estimate=cost,
    )
    return call, operands


def affinity_merge_forward(x1, x2, params, *, block_rows=512,
                           out_dtype=jnp.float32):
    """Forward pass of AffinityMergeLayer_extra6_relu.

    `params` should come from `prepare_params` (fc1 weight pre-split into
    w1a/w1b). A raw dict with "w1" is accepted and prepared on the fly, but
    that re-slices the weight every call — prepare once outside instead.
    """
    if "w1a" not in params:
        params = prepare_params(params, x1.shape[1])

    tm = _choose_tile(int(x1.shape[0]), block_rows)

    try:
        call, operands = _build_call(x1, x2, params, tm, out_dtype,
                                     single_buffer_weights=True)
        return call(*operands)
    except Exception:
        # Fallback for jax builds where pipeline_mode=pl.Buffered(1) on a
        # constant-index BlockSpec is unsupported: default double-buffering.
        call, operands = _build_call(x1, x2, params, tm, out_dtype,
                                     single_buffer_weights=False)
        return call(*operands)


def init_raw_params(key, dim1, dim2, dim3, dim4, dtype=jnp.bfloat16):
    """Synthetic parameters matching the module's shapes.

    Weights are [in, out] in `dtype` (bf16 by default: bf16-native MXU on
    v6e/v7x and half the resident weight VMEM); biases are [1, out] f32 (added
    post-accumulation). fc1/fc2 use xavier-normal as in the module.
    """
    dims = [dim1 + dim2, dim3 * 2, dim3 * 4, dim3 * 8, dim3 * 4, dim3 * 2, dim4]
    params = {}
    keys = jax.random.split(key, 12)
    for i in range(6):
        fan_in, fan_out = dims[i], dims[i + 1]
        if i < 2:   # xavier normal
            std = (2.0 / (fan_in + fan_out)) ** 0.5
        else:       # stand-in for PyTorch's default Linear init
            std = (1.0 / fan_in) ** 0.5
        w = std * jax.random.normal(keys[2 * i], (fan_in, fan_out), jnp.float32)
        b = 0.01 * jax.random.normal(keys[2 * i + 1], (1, fan_out), jnp.float32)
        params[f"w{i + 1}"] = w.astype(dtype)
        params[f"b{i + 1}"] = b   # biases stay f32
    return params


def _reference(x1, x2, raw_params, compute_dtype=None):
    """Pure-JAX reference of the PyTorch forward.

    compute_dtype=None -> full f32 math. compute_dtype=bf16 emulates the
    kernel's MXU path (bf16 dot operands, f32 accumulation, f32 bias/ReLU).
    """
    h = jnp.concatenate([x1, x2], axis=1).astype(jnp.float32)
    for i in range(1, 7):
        w = raw_params[f"w{i}"]
        if compute_dtype is None:
            acc = jnp.dot(h, w.astype(jnp.float32))
        else:
            acc = jnp.dot(h.astype(compute_dtype), w.astype(compute_dtype),
                          preferred_element_type=jnp.float32)
        h = acc + raw_params[f"b{i}"].astype(jnp.float32)
        if i < 6:
            h = jnp.maximum(h, 0.0)
    return h


if __name__ == "__main__":
    # Small shapes consistent with the module's forward: x1 [B, dim1], x2 [B, dim2].
    B, dim1, dim2, dim3, dim4 = 8, 16, 16, 32, 8

    key = jax.random.PRNGKey(0)
    k_p, k_x1, k_x2 = jax.random.split(key, 3)
    x1 = jax.random.normal(k_x1, (B, dim1), jnp.float32)
    x2 = jax.random.normal(k_x2, (B, dim2), jnp.float32)

    # --- f32 path: exact correctness vs the pure-JAX reference --------------
    raw_f32 = init_raw_params(k_p, dim1, dim2, dim3, dim4, dtype=jnp.float32)
    prepped_f32 = prepare_params(raw_f32, dim1)        # one-time preprocessing
    out = jax.block_until_ready(affinity_merge_forward(x1, x2, prepped_f32))
    ref = _reference(x1, x2, raw_f32)
    assert out.shape == (B, dim4)
    assert jnp.allclose(out, ref, atol=1e-4, rtol=1e-4), "f32 mismatch vs reference"

    # --- default bf16 weight path (bf16 MXU, f32 accumulation) --------------
    raw_bf16 = {k: (v.astype(jnp.bfloat16) if k.startswith("w") else v)
                for k, v in raw_f32.items()}
    prepped_bf16 = prepare_params(raw_bf16, dim1)
    out_bf16 = jax.block_until_ready(
        affinity_merge_forward(x1.astype(jnp.bfloat16),
                               x2.astype(jnp.bfloat16), prepped_bf16))
    ref_bf16 = _reference(x1, x2, raw_bf16, compute_dtype=jnp.bfloat16)
    assert out_bf16.shape == (B, dim4)
    assert bool(jnp.all(jnp.isfinite(out_bf16)))
    assert jnp.allclose(out_bf16, ref_bf16, atol=5e-2, rtol=5e-2), \
        "bf16 mismatch vs bf16-emulating reference"

    # --- larger batch: >= 2 grid steps so the 'parallel' axis shards (v7x) --
    B2 = 100
    k_y1, k_y2 = jax.random.split(jax.random.PRNGKey(1))
    y1 = jax.random.normal(k_y1, (B2, dim1), jnp.float32)
    y2 = jax.random.normal(k_y2, (B2, dim2), jnp.float32)
    out2 = jax.block_until_ready(affinity_merge_forward(y1, y2, prepped_f32))
    ref2 = _reference(y1, y2, raw_f32)
    assert out2.shape == (B2, dim4)
    assert jnp.allclose(out2, ref2, atol=1e-4, rtol=1e-4), "tiled-path mismatch"

    print("KERNEL_OK")
</pallas_src>

<mosaic_0001>
module attributes {stable_mosaic.version = 11 : i64} {
  func.func @_mlp_kernel(%arg0: i32, %arg1: memref<8x16xf32, #tpu.memory_space<vmem>>, %arg2: memref<8x16xf32, #tpu.memory_space<vmem>>, %arg3: memref<16x64xf32, #tpu.memory_space<vmem>>, %arg4: memref<16x64xf32, #tpu.memory_space<vmem>>, %arg5: memref<1x64xf32, #tpu.memory_space<vmem>>, %arg6: memref<64x128xf32, #tpu.memory_space<vmem>>, %arg7: memref<1x128xf32, #tpu.memory_space<vmem>>, %arg8: memref<128x256xf32, #tpu.memory_space<vmem>>, %arg9: memref<1x256xf32, #tpu.memory_space<vmem>>, %arg10: memref<256x128xf32, #tpu.memory_space<vmem>>, %arg11: memref<1x128xf32, #tpu.memory_space<vmem>>, %arg12: memref<128x64xf32, #tpu.memory_space<vmem>>, %arg13: memref<1x64xf32, #tpu.memory_space<vmem>>, %arg14: memref<64x8xf32, #tpu.memory_space<vmem>>, %arg15: memref<1x8xf32, #tpu.memory_space<vmem>>, %arg16: memref<8x8xf32, #tpu.memory_space<vmem>>) attributes {dimension_semantics = [#tpu.dimension_semantics<parallel>], iteration_bounds = array<i64: 1>, scalar_prefetch = 0 : i64, scratch_operands = 0 : i64, tpu.core_type = #tpu.core_type<tc>, window_params = [{transform_indices = @transform_0, window_bounds = array<i64: 8, 16>}, {transform_indices = @transform_1, window_bounds = array<i64: 8, 16>}, {pipeline_mode = #tpu.pipeline_mode<synchronous>, transform_indices = @transform_2, window_bounds = array<i64: 16, 64>}, {pipeline_mode = #tpu.pipeline_mode<synchronous>, transform_indices = @transform_3, window_bounds = array<i64: 16, 64>}, {pipeline_mode = #tpu.pipeline_mode<synchronous>, transform_indices = @transform_4, window_bounds = array<i64: 1, 64>}, {pipeline_mode = #tpu.pipeline_mode<synchronous>, transform_indices = @transform_5, window_bounds = array<i64: 64, 128>}, {pipeline_mode = #tpu.pipeline_mode<synchronous>, transform_indices = @transform_6, window_bounds = array<i64: 1, 128>}, {pipeline_mode = #tpu.pipeline_mode<synchronous>, transform_indices = @transform_7, window_bounds = array<i64: 128, 256>}, {pipeline_mode = #tpu.pipeline_mode<synchronous>, transform_indices = @transform_8, window_bounds = array<i64: 1, 256>}, {pipeline_mode = #tpu.pipeline_mode<synchronous>, transform_indices = @transform_9, window_bounds = array<i64: 256, 128>}, {pipeline_mode = #tpu.pipeline_mode<synchronous>, transform_indices = @transform_10, window_bounds = array<i64: 1, 128>}, {pipeline_mode = #tpu.pipeline_mode<synchronous>, transform_indices = @transform_11, window_bounds = array<i64: 128, 64>}, {pipeline_mode = #tpu.pipeline_mode<synchronous>, transform_indices = @transform_12, window_bounds = array<i64: 1, 64>}, {pipeline_mode = #tpu.pipeline_mode<synchronous>, transform_indices = @transform_13, window_bounds = array<i64: 64, 8>}, {pipeline_mode = #tpu.pipeline_mode<synchronous>, transform_indices = @transform_14, window_bounds = array<i64: 1, 8>}, {transform_indices = @transform_15, window_bounds = array<i64: 8, 8>}]} {
    %c0 = arith.constant 0 : index
    %c0_0 = arith.constant 0 : index
    %0 = vector.load %arg3[%c0, %c0_0] : memref<16x64xf32, #tpu.memory_space<vmem>>, vector<16x64xf32>
    %c0_1 = arith.constant 0 : index
    %c0_2 = arith.constant 0 : index
    %1 = vector.load %arg4[%c0_1, %c0_2] : memref<16x64xf32, #tpu.memory_space<vmem>>, vector<16x64xf32>
    %c0_3 = arith.constant 0 : index
    %c0_4 = arith.constant 0 : index
    %2 = vector.load %arg1[%c0_3, %c0_4] : memref<8x16xf32, #tpu.memory_space<vmem>>, vector<8x16xf32>
    %cst = arith.constant dense<0.000000e+00> : vector<8x64xf32>
    %3 = tpu.matmul %2, %0, %cst {dimension_numbers = #tpu.dot_dimension_numbers<[1], [0], [0], [1], [0, 0, 1, 1], [], []>} : vector<8x16xf32>, vector<16x64xf32>, vector<8x64xf32> -> vector<8x64xf32>
    %c0_5 = arith.constant 0 : index
    %c0_6 = arith.constant 0 : index
    %4 = vector.load %arg2[%c0_5, %c0_6] : memref<8x16xf32, #tpu.memory_space<vmem>>, vector<8x16xf32>
    %cst_7 = arith.constant dense<0.000000e+00> : vector<8x64xf32>
    %5 = tpu.matmul %4, %1, %cst_7 {dimension_numbers = #tpu.dot_dimension_numbers<[1], [0], [0], [1], [0, 0, 1, 1], [], []>} : vector<8x16xf32>, vector<16x64xf32>, vector<8x64xf32> -> vector<8x64xf32>
    %6 = arith.addf %3, %5 : vector<8x64xf32>
    %c0_8 = arith.constant 0 : index
    %c0_9 = arith.constant 0 : index
    %7 = vector.load %arg5[%c0_8, %c0_9] : memref<1x64xf32, #tpu.memory_space<vmem>>, vector<1x64xf32>
    %8 = vector.broadcast %7 : vector<1x64xf32> to vector<8x64xf32>
    %9 = arith.addf %6, %8 : vector<8x64xf32>
    %cst_10 = arith.constant 0.000000e+00 : f32
    %10 = vector.broadcast %cst_10 : f32 to vector<8x64xf32>
    %11 = arith.maximumf %9, %10 : vector<8x64xf32>
    %c0_11 = arith.constant 0 : index
    %c0_12 = arith.constant 0 : index
    %12 = vector.load %arg6[%c0_11, %c0_12] : memref<64x128xf32, #tpu.memory_space<vmem>>, vector<64x128xf32>
    %cst_13 = arith.constant dense<0.000000e+00> : vector<8x128xf32>
    %13 = tpu.matmul %11, %12, %cst_13 {dimension_numbers = #tpu.dot_dimension_numbers<[1], [0], [0], [1], [0, 0, 1, 1], [], []>} : vector<8x64xf32>, vector<64x128xf32>, vector<8x128xf32> -> vector<8x128xf32>
    %c0_14 = arith.constant 0 : index
    %c0_15 = arith.constant 0 : index
    %14 = vector.load %arg7[%c0_14, %c0_15] : memref<1x128xf32, #tpu.memory_space<vmem>>, vector<1x128xf32>
    %15 = vector.broadcast %14 : vector<1x128xf32> to vector<8x128xf32>
    %16 = arith.addf %13, %15 : vector<8x128xf32>
    %cst_16 = arith.constant 0.000000e+00 : f32
    %17 = vector.broadcast %cst_16 : f32 to vector<8x128xf32>
    %18 = arith.maximumf %16, %17 : vector<8x128xf32>
    %c0_17 = arith.constant 0 : index
    %c0_18 = arith.constant 0 : index
    %19 = vector.load %arg8[%c0_17, %c0_18] : memref<128x256xf32, #tpu.memory_space<vmem>>, vector<128x256xf32>
    %cst_19 = arith.constant dense<0.000000e+00> : vector<8x256xf32>
    %20 = tpu.matmul %18, %19, %cst_19 {dimension_numbers = #tpu.dot_dimension_numbers<[1], [0], [0], [1], [0, 0, 1, 1], [], []>} : vector<8x128xf32>, vector<128x256xf32>, vector<8x256xf32> -> vector<8x256xf32>
    %c0_20 = arith.constant 0 : index
    %c0_21 = arith.constant 0 : index
    %21 = vector.load %arg9[%c0_20, %c0_21] : memref<1x256xf32, #tpu.memory_space<vmem>>, vector<1x256xf32>
    %22 = vector.broadcast %21 : vector<1x256xf32> to vector<8x256xf32>
    %23 = arith.addf %20, %22 : vector<8x256xf32>
    %cst_22 = arith.constant 0.000000e+00 : f32
    %24 = vector.broadcast %cst_22 : f32 to vector<8x256xf32>
    %25 = arith.maximumf %23, %24 : vector<8x256xf32>
    %c0_23 = arith.constant 0 : index
    %c0_24 = arith.constant 0 : index
    %26 = vector.load %arg10[%c0_23, %c0_24] : memref<256x128xf32, #tpu.memory_space<vmem>>, vector<256x128xf32>
    %cst_25 = arith.constant dense<0.000000e+00> : vector<8x128xf32>
    %27 = tpu.matmul %25, %26, %cst_25 {dimension_numbers = #tpu.dot_dimension_numbers<[1], [0], [0], [1], [0, 0, 1, 1], [], []>} : vector<8x256xf32>, vector<256x128xf32>, vector<8x128xf32> -> vector<8x128xf32>
    %c0_26 = arith.constant 0 : index
    %c0_27 = arith.constant 0 : index
    %28 = vector.load %arg11[%c0_26, %c0_27] : memref<1x128xf32, #tpu.memory_space<vmem>>, vector<1x128xf32>
    %29 = vector.broadcast %28 : vector<1x128xf32> to vector<8x128xf32>
    %30 = arith.addf %27, %29 : vector<8x128xf32>
    %cst_28 = arith.constant 0.000000e+00 : f32
    %31 = vector.broadcast %cst_28 : f32 to vector<8x128xf32>
    %32 = arith.maximumf %30, %31 : vector<8x128xf32>
    %c0_29 = arith.constant 0 : index
    %c0_30 = arith.constant 0 : index
    %33 = vector.load %arg12[%c0_29, %c0_30] : memref<128x64xf32, #tpu.memory_space<vmem>>, vector<128x64xf32>
    %cst_31 = arith.constant dense<0.000000e+00> : vector<8x64xf32>
    %34 = tpu.matmul %32, %33, %cst_31 {dimension_numbers = #tpu.dot_dimension_numbers<[1], [0], [0], [1], [0, 0, 1, 1], [], []>} : vector<8x128xf32>, vector<128x64xf32>, vector<8x64xf32> -> vector<8x64xf32>
    %c0_32 = arith.constant 0 : index
    %c0_33 = arith.constant 0 : index
    %35 = vector.load %arg13[%c0_32, %c0_33] : memref<1x64xf32, #tpu.memory_space<vmem>>, vector<1x64xf32>
    %36 = vector.broadcast %35 : vector<1x64xf32> to vector<8x64xf32>
    %37 = arith.addf %34, %36 : vector<8x64xf32>
    %cst_34 = arith.constant 0.000000e+00 : f32
    %38 = vector.broadcast %cst_34 : f32 to vector<8x64xf32>
    %39 = arith.maximumf %37, %38 : vector<8x64xf32>
    %c0_35 = arith.constant 0 : index
    %c0_36 = arith.constant 0 : index
    %40 = vector.load %arg14[%c0_35, %c0_36] : memref<64x8xf32, #tpu.memory_space<vmem>>, vector<64x8xf32>
    %cst_37 = arith.constant dense<0.000000e+00> : vector<8x8xf32>
    %41 = tpu.matmul %39, %40, %cst_37 {dimension_numbers = #tpu.dot_dimension_numbers<[1], [0], [0], [1], [0, 0, 1, 1], [], []>} : vector<8x64xf32>, vector<64x8xf32>, vector<8x8xf32> -> vector<8x8xf32>
    %c0_38 = arith.constant 0 : index
    %c0_39 = arith.constant 0 : index
    %42 = vector.load %arg15[%c0_38, %c0_39] : memref<1x8xf32, #tpu.memory_space<vmem>>, vector<1x8xf32>
    %43 = vector.broadcast %42 : vector<1x8xf32> to vector<8x8xf32>
    %44 = arith.addf %41, %43 : vector<8x8xf32>
    %c0_40 = arith.constant 0 : index
    %c0_41 = arith.constant 0 : index
    %45 = vector.load %arg16[%c0_40, %c0_41] : memref<8x8xf32, #tpu.memory_space<vmem>>, vector<8x8xf32>
    tpu.vector_store %arg16[%c0_40, %c0_41], %44 {strides = array<i32>} : memref<8x8xf32, #tpu.memory_space<vmem>>, vector<8x8xf32>,
    return
  }
  func.func @transform_0(%arg0: i32) -> (i32, i32) {
    %c0_i32 = arith.constant 0 : i32
    %c0_i32_0 = arith.constant 0 : i32
    return %arg0, %c0_i32 : i32, i32
  }
  func.func @transform_1(%arg0: i32) -> (i32, i32) {
    %c0_i32 = arith.constant 0 : i32
    %c0_i32_0 = arith.constant 0 : i32
    return %arg0, %c0_i32 : i32, i32
  }
  func.func @transform_2(%arg0: i32) -> (i32, i32) {
    %c0_i32 = arith.constant 0 : i32
    %c0_i32_0 = arith.constant 0 : i32
    %c0_i32_1 = arith.constant 0 : i32
    return %c0_i32, %c0_i32_0 : i32, i32
  }
  func.func @transform_3(%arg0: i32) -> (i32, i32) {
    %c0_i32 = arith.constant 0 : i32
    %c0_i32_0 = arith.constant 0 : i32
    %c0_i32_1 = arith.constant 0 : i32
    return %c0_i32, %c0_i32_0 : i32, i32
  }
  func.func @transform_4(%arg0: i32) -> (i32, i32) {
    %c0_i32 = arith.constant 0 : i32
    %c0_i32_0 = arith.constant 0 : i32
    %c0_i32_1 = arith.constant 0 : i32
    return %c0_i32, %c0_i32_0 : i32, i32
  }
  func.func @transform_5(%arg0: i32) -> (i32, i32) {
    %c0_i32 = arith.constant 0 : i32
    %c0_i32_0 = arith.constant 0 : i32
    %c0_i32_1 = arith.constant 0 : i32
    return %c0_i32, %c0_i32_0 : i32, i32
  }
  func.func @transform_6(%arg0: i32) -> (i32, i32) {
    %c0_i32 = arith.constant 0 : i32
    %c0_i32_0 = arith.constant 0 : i32
    %c0_i32_1 = arith.constant 0 : i32
    return %c0_i32, %c0_i32_0 : i32, i32
  }
  func.func @transform_7(%arg0: i32) -> (i32, i32) {
    %c0_i32 = arith.constant 0 : i32
    %c0_i32_0 = arith.constant 0 : i32
    %c0_i32_1 = arith.constant 0 : i32
    return %c0_i32, %c0_i32_0 : i32, i32
  }
  func.func @transform_8(%arg0: i32) -> (i32, i32) {
    %c0_i32 = arith.constant 0 : i32
    %c0_i32_0 = arith.constant 0 : i32
    %c0_i32_1 = arith.constant 0 : i32
    return %c0_i32, %c0_i32_0 : i32, i32
  }
  func.func @transform_9(%arg0: i32) -> (i32, i32) {
    %c0_i32 = arith.constant 0 : i32
    %c0_i32_0 = arith.constant 0 : i32
    %c0_i32_1 = arith.constant 0 : i32
    return %c0_i32, %c0_i32_0 : i32, i32
  }
  func.func @transform_10(%arg0: i32) -> (i32, i32) {
    %c0_i32 = arith.constant 0 : i32
    %c0_i32_0 = arith.constant 0 : i32
    %c0_i32_1 = arith.constant 0 : i32
    return %c0_i32, %c0_i32_0 : i32, i32
  }
  func.func @transform_11(%arg0: i32) -> (i32, i32) {
    %c0_i32 = arith.constant 0 : i32
    %c0_i32_0 = arith.constant 0 : i32
    %c0_i32_1 = arith.constant 0 : i32
    return %c0_i32, %c0_i32_0 : i32, i32
  }
  func.func @transform_12(%arg0: i32) -> (i32, i32) {
    %c0_i32 = arith.constant 0 : i32
    %c0_i32_0 = arith.constant 0 : i32
    %c0_i32_1 = arith.constant 0 : i32
    return %c0_i32, %c0_i32_0 : i32, i32
  }
  func.func @transform_13(%arg0: i32) -> (i32, i32) {
    %c0_i32 = arith.constant 0 : i32
    %c0_i32_0 = arith.constant 0 : i32
    %c0_i32_1 = arith.constant 0 : i32
    return %c0_i32, %c0_i32_0 : i32, i32
  }
  func.func @transform_14(%arg0: i32) -> (i32, i32) {
    %c0_i32 = arith.constant 0 : i32
    %c0_i32_0 = arith.constant 0 : i32
    %c0_i32_1 = arith.constant 0 : i32
    return %c0_i32, %c0_i32_0 : i32, i32
  }
  func.func @transform_15(%arg0: i32) -> (i32, i32) {
    %c0_i32 = arith.constant 0 : i32
    %c0_i32_0 = arith.constant 0 : i32
    return %arg0, %c0_i32 : i32, i32
  }
}

module attributes {stable_mosaic.version = 11 : i64} {
  func.func @_mlp_kernel(%arg0: i32, %arg1: memref<8x16xf32, #tpu.memory_space<vmem>>, %arg2: memref<8x16xf32, #tpu.memory_space<vmem>>, %arg3: memref<16x64xf32, #tpu.memory_space<vmem>>, %arg4: memref<16x64xf32, #tpu.memory_space<vmem>>, %arg5: memref<1x64xf32, #tpu.memory_space<vmem>>, %arg6: memref<64x128xf32, #tpu.memory_space<vmem>>, %arg7: memref<1x128xf32, #tpu.memory_space<vmem>>, %arg8: memref<128x256xf32, #tpu.memory_space<vmem>>, %arg9: memref<1x256xf32, #tpu.memory_space<vmem>>, %arg10: memref<256x128xf32, #tpu.memory_space<vmem>>, %arg11: memref<1x128xf32, #tpu.memory_space<vmem>>, %arg12: memref<128x64xf32, #tpu.memory_space<vmem>>, %arg13: memref<1x64xf32, #tpu.memory_space<vmem>>, %arg14: memref<64x8xf32, #tpu.memory_space<vmem>>, %arg15: memref<1x8xf32, #tpu.memory_space<vmem>>, %arg16: memref<8x8xf32, #tpu.memory_space<vmem>>) attributes {dimension_semantics = [#tpu.dimension_semantics<parallel>], iteration_bounds = array<i64: 1>, scalar_prefetch = 0 : i64, scratch_operands = 0 : i64, tpu.core_type = #tpu.core_type<tc>, window_params = [{transform_indices = @transform_0, window_bounds = array<i64: 8, 16>}, {transform_indices = @transform_1, window_bounds = array<i64: 8, 16>}, {pipeline_mode = #tpu.pipeline_mode<synchronous>, transform_indices = @transform_2, window_bounds = array<i64: 16, 64>}, {pipeline_mode = #tpu.pipeline_mode<synchronous>, transform_indices = @transform_3, window_bounds = array<i64: 16, 64>}, {pipeline_mode = #tpu.pipeline_mode<synchronous>, transform_indices = @transform_4, window_bounds = array<i64: 1, 64>}, {pipeline_mode = #tpu.pipeline_mode<synchronous>, transform_indices = @transform_5, window_bounds = array<i64: 64, 128>}, {pipeline_mode = #tpu.pipeline_mode<synchronous>, transform_indices = @transform_6, window_bounds = array<i64: 1, 128>}, {pipeline_mode = #tpu.pipeline_mode<synchronous>, transform_indices = @transform_7, window_bounds = array<i64: 128, 256>}, {pipeline_mode = #tpu.pipeline_mode<synchronous>, transform_indices = @transform_8, window_bounds = array<i64: 1, 256>}, {pipeline_mode = #tpu.pipeline_mode<synchronous>, transform_indices = @transform_9, window_bounds = array<i64: 256, 128>}, {pipeline_mode = #tpu.pipeline_mode<synchronous>, transform_indices = @transform_10, window_bounds = array<i64: 1, 128>}, {pipeline_mode = #tpu.pipeline_mode<synchronous>, transform_indices = @transform_11, window_bounds = array<i64: 128, 64>}, {pipeline_mode = #tpu.pipeline_mode<synchronous>, transform_indices = @transform_12, window_bounds = array<i64: 1, 64>}, {pipeline_mode = #tpu.pipeline_mode<synchronous>, transform_indices = @transform_13, window_bounds = array<i64: 64, 8>}, {pipeline_mode = #tpu.pipeline_mode<synchronous>, transform_indices = @transform_14, window_bounds = array<i64: 1, 8>}, {transform_indices = @transform_15, window_bounds = array<i64: 8, 8>}]} {
    %c0 = arith.constant 0 : index
    %c0_0 = arith.constant 0 : index
    %0 = vector.load %arg3[%c0, %c0_0] : memref<16x64xf32, #tpu.memory_space<vmem>>, vector<16x64xf32>
    %c0_1 = arith.constant 0 : index
    %c0_2 = arith.constant 0 : index
    %1 = vector.load %arg4[%c0_1, %c0_2] : memref<16x64xf32, #tpu.memory_space<vmem>>, vector<16x64xf32>
    %c0_3 = arith.constant 0 : index
    %c0_4 = arith.constant 0 : index
    %2 = vector.load %arg1[%c0_3, %c0_4] : memref<8x16xf32, #tpu.memory_space<vmem>>, vector<8x16xf32>
    %cst = arith.constant dense<0.000000e+00> : vector<8x64xf32>
    %3 = tpu.matmul %2, %0, %cst {dimension_numbers = #tpu.dot_dimension_numbers<[1], [0], [0], [1], [0, 0, 1, 1], [], []>} : vector<8x16xf32>, vector<16x64xf32>, vector<8x64xf32> -> vector<8x64xf32>
    %c0_5 = arith.constant 0 : index
    %c0_6 = arith.constant 0 : index
    %4 = vector.load %arg2[%c0_5, %c0_6] : memref<8x16xf32, #tpu.memory_space<vmem>>, vector<8x16xf32>
    %cst_7 = arith.constant dense<0.000000e+00> : vector<8x64xf32>
    %5 = tpu.matmul %4, %1, %cst_7 {dimension_numbers = #tpu.dot_dimension_numbers<[1], [0], [0], [1], [0, 0, 1, 1], [], []>} : vector<8x16xf32>, vector<16x64xf32>, vector<8x64xf32> -> vector<8x64xf32>
    %6 = arith.addf %3, %5 : vector<8x64xf32>
    %c0_8 = arith.constant 0 : index
    %c0_9 = arith.constant 0 : index
    %7 = vector.load %arg5[%c0_8, %c0_9] : memref<1x64xf32, #tpu.memory_space<vmem>>, vector<1x64xf32>
    %8 = vector.broadcast %7 : vector<1x64xf32> to vector<8x64xf32>
    %9 = arith.addf %6, %8 : vector<8x64xf32>
    %cst_10 = arith.constant 0.000000e+00 : f32
    %10 = vector.broadcast %cst_10 : f32 to vector<8x64xf32>
    %11 = arith.maximumf %9, %10 : vector<8x64xf32>
    %c0_11 = arith.constant 0 : index
    %c0_12 = arith.constant 0 : index
    %12 = vector.load %arg6[%c0_11, %c0_12] : memref<64x128xf32, #tpu.memory_space<vmem>>, vector<64x128xf32>
    %cst_13 = arith.constant dense<0.000000e+00> : vector<8x128xf32>
    %13 = tpu.matmul %11, %12, %cst_13 {dimension_numbers = #tpu.dot_dimension_numbers<[1], [0], [0], [1], [0, 0, 1, 1], [], []>} : vector<8x64xf32>, vector<64x128xf32>, vector<8x128xf32> -> vector<8x128xf32>
    %c0_14 = arith.constant 0 : index
    %c0_15 = arith.constant 0 : index
    %14 = vector.load %arg7[%c0_14, %c0_15] : memref<1x128xf32, #tpu.memory_space<vmem>>, vector<1x128xf32>
    %15 = vector.broadcast %14 : vector<1x128xf32> to vector<8x128xf32>
    %16 = arith.addf %13, %15 : vector<8x128xf32>
    %cst_16 = arith.constant 0.000000e+00 : f32
    %17 = vector.broadcast %cst_16 : f32 to vector<8x128xf32>
    %18 = arith.maximumf %16, %17 : vector<8x128xf32>
    %c0_17 = arith.constant 0 : index
    %c0_18 = arith.constant 0 : index
    %19 = vector.load %arg8[%c0_17, %c0_18] : memref<128x256xf32, #tpu.memory_space<vmem>>, vector<128x256xf32>
    %cst_19 = arith.constant dense<0.000000e+00> : vector<8x256xf32>
    %20 = tpu.matmul %18, %19, %cst_19 {dimension_numbers = #tpu.dot_dimension_numbers<[1], [0], [0], [1], [0, 0, 1, 1], [], []>} : vector<8x128xf32>, vector<128x256xf32>, vector<8x256xf32> -> vector<8x256xf32>
    %c0_20 = arith.constant 0 : index
    %c0_21 = arith.constant 0 : index
    %21 = vector.load %arg9[%c0_20, %c0_21] : memref<1x256xf32, #tpu.memory_space<vmem>>, vector<1x256xf32>
    %22 = vector.broadcast %21 : vector<1x256xf32> to vector<8x256xf32>
    %23 = arith.addf %20, %22 : vector<8x256xf32>
    %cst_22 = arith.constant 0.000000e+00 : f32
    %24 = vector.broadcast %cst_22 : f32 to vector<8x256xf32>
    %25 = arith.maximumf %23, %24 : vector<8x256xf32>
    %c0_23 = arith.constant 0 : index
    %c0_24 = arith.constant 0 : index
    %26 = vector.load %arg10[%c0_23, %c0_24] : memref<256x128xf32, #tpu.memory_space<vmem>>, vector<256x128xf32>
    %cst_25 = arith.constant dense<0.000000e+00> : vector<8x128xf32>
    %27 = tpu.matmul %25, %26, %cst_25 {dimension_numbers = #tpu.dot_dimension_numbers<[1], [0], [0], [1], [0, 0, 1, 1], [], []>} : vector<8x256xf32>, vector<256x128xf32>, vector<8x128xf32> -> vector<8x128xf32>
    %c0_26 = arith.constant 0 : index
    %c0_27 = arith.constant 0 : index
    %28 = vector.load %arg11[%c0_26, %c0_27] : memref<1x128xf32, #tpu.memory_space<vmem>>, vector<1x128xf32>
    %29 = vector.broadcast %28 : vector<1x128xf32> to vector<8x128xf32>
    %30 = arith.addf %27, %29 : vector<8x128xf32>
    %cst_28 = arith.constant 0.000000e+00 : f32
    %31 = vector.broadcast %cst_28 : f32 to vector<8x128xf32>
    %32 = arith.maximumf %30, %31 : vector<8x128xf32>
    %c0_29 = arith.constant 0 : index
    %c0_30 = arith.constant 0 : index
    %33 = vector.load %arg12[%c0_29, %c0_30] : memref<128x64xf32, #tpu.memory_space<vmem>>, vector<128x64xf32>
    %cst_31 = arith.constant dense<0.000000e+00> : vector<8x64xf32>
    %34 = tpu.matmul %32, %33, %cst_31 {dimension_numbers = #tpu.dot_dimension_numbers<[1], [0], [0], [1], [0, 0, 1, 1], [], []>} : vector<8x128xf32>, vector<128x64xf32>, vector<8x64xf32> -> vector<8x64xf32>
    %c0_32 = arith.constant 0 : index
    %c0_33 = arith.constant 0 : index
    %35 = vector.load %arg13[%c0_32, %c0_33] : memref<1x64xf32, #tpu.memory_space<vmem>>, vector<1x64xf32>
    %36 = vector.broadcast %35 : vector<1x64xf32> to vector<8x64xf32>
    %37 = arith.addf %34, %36 : vector<8x64xf32>
    %cst_34 = arith.constant 0.000000e+00 : f32
    %38 = vector.broadcast %cst_34 : f32 to vector<8x64xf32>
    %39 = arith.maximumf %37, %38 : vector<8x64xf32>
    %c0_35 = arith.constant 0 : index
    %c0_36 = arith.constant 0 : index
    %40 = vector.load %arg14[%c0_35, %c0_36] : memref<64x8xf32, #tpu.memory_space<vmem>>, vector<64x8xf32>
    %cst_37 = arith.constant dense<0.000000e+00> : vector<8x8xf32>
    %41 = tpu.matmul %39, %40, %cst_37 {dimension_numbers = #tpu.dot_dimension_numbers<[1], [0], [0], [1], [0, 0, 1, 1], [], []>} : vector<8x64xf32>, vector<64x8xf32>, vector<8x8xf32> -> vector<8x8xf32>
    %c0_38 = arith.constant 0 : index
    %c0_39 = arith.constant 0 : index
    %42 = vector.load %arg15[%c0_38, %c0_39] : memref<1x8xf32, #tpu.memory_space<vmem>>, vector<1x8xf32>
    %43 = vector.broadcast %42 : vector<1x8xf32> to vector<8x8xf32>
    %44 = arith.addf %41, %43 : vector<8x8xf32>
    %c0_40 = arith.constant 0 : index
    %c0_41 = arith.constant 0 : index
    %45 = vector.load %arg16[%c0_40, %c0_41] : memref<8x8xf32, #tpu.memory_space<vmem>>, vector<8x8xf32>
    tpu.vector_store %arg16[%c0_40, %c0_41], %44 {strides = array<i32>} : memref<8x8xf32, #tpu.memory_space<vmem>>, vector<8x8xf32>,
    return
  }
  func.func @transform_0(%arg0: i32) -> (i32, i32) {
    %c0_i32 = arith.constant 0 : i32
    %c0_i32_0 = arith.constant 0 : i32
    return %arg0, %c0_i32 : i32, i32
  }
  func.func @transform_1(%arg0: i32) -> (i32, i32) {
    %c0_i32 = arith.constant 0 : i32
    %c0_i32_0 = arith.constant 0 : i32
    return %arg0, %c0_i32 : i32, i32
  }
  func.func @transform_2(%arg0: i32) -> (i32, i32) {
    %c0_i32 = arith.constant 0 : i32
    %c0_i32_0 = arith.constant 0 : i32
    %c0_i32_1 = arith.constant 0 : i32
    return %c0_i32, %c0_i32_0 : i32, i32
  }
  func.func @transform_3(%arg0: i32) -> (i32, i32) {
    %c0_i32 = arith.constant 0 : i32
    %c0_i32_0 = arith.constant 0 : i32
    %c0_i32_1 = arith.constant 0 : i32
    return %c0_i32, %c0_i32_0 : i32, i32
  }
  func.func @transform_4(%arg0: i32) -> (i32, i32) {
    %c0_i32 = arith.constant 0 : i32
    %c0_i32_0 = arith.constant 0 : i32
    %c0_i32_1 = arith.constant 0 : i32
    return %c0_i32, %c0_i32_0 : i32, i32
  }
  func.func @transform_5(%arg0: i32) -> (i32, i32) {
    %c0_i32 = arith.constant 0 : i32
    %c0_i32_0 = arith.constant 0 : i32
    %c0_i32_1 = arith.constant 0 : i32
    return %c0_i32, %c0_i32_0 : i32, i32
  }
  func.func @transform_6(%arg0: i32) -> (i32, i32) {
    %c0_i32 = arith.constant 0 : i32
    %c0_i32_0 = arith.constant 0 : i32
    %c0_i32_1 = arith.constant 0 : i32
    return %c0_i32, %c0_i32_0 : i32, i32
  }
  func.func @transform_7(%arg0: i32) -> (i32, i32) {
    %c0_i32 = arith.constant 0 : i32
    %c0_i32_0 = arith.constant 0 : i32
    %c0_i32_1 = arith.constant 0 : i32
    return %c0_i32, %c0_i32_0 : i32, i32
  }
  func.func @transform_8(%arg0: i32) -> (i32, i32) {
    %c0_i32 = arith.constant 0 : i32
    %c0_i32_0 = arith.constant 0 : i32
    %c0_i32_1 = arith.constant 0 : i32
    return %c0_i32, %c0_i32_0 : i32, i32
  }
  func.func @transform_9(%arg0: i32) -> (i32, i32) {
    %c0_i32 = arith.constant 0 : i32
    %c0_i32_0 = arith.constant 0 : i32
    %c0_i32_1 = arith.constant 0 : i32
    return %c0_i32, %c0_i32_0 : i32, i32
  }
  func.func @transform_10(%arg0: i32) -> (i32, i32) {
    %c0_i32 = arith.constant 0 : i32
    %c0_i32_0 = arith.constant 0 : i32
    %c0_i32_1 = arith.constant 0 : i32
    return %c0_i32, %c0_i32_0 : i32, i32
  }
  func.func @transform_11(%arg0: i32) -> (i32, i32) {
    %c0_i32 = arith.constant 0 : i32
    %c0_i32_0 = arith.constant 0 : i32
    %c0_i32_1 = arith.constant 0 : i32
    return %c0_i32, %c0_i32_0 : i32, i32
  }
  func.func @transform_12(%arg0: i32) -> (i32, i32) {
    %c0_i32 = arith.constant 0 : i32
    %c0_i32_0 = arith.constant 0 : i32
    %c0_i32_1 = arith.constant 0 : i32
    return %c0_i32, %c0_i32_0 : i32, i32
  }
  func.func @transform_13(%arg0: i32) -> (i32, i32) {
    %c0_i32 = arith.constant 0 : i32
    %c0_i32_0 = arith.constant 0 : i32
    %c0_i32_1 = arith.constant 0 : i32
    return %c0_i32, %c0_i32_0 : i32, i32
  }
  func.func @transform_14(%arg0: i32) -> (i32, i32) {
    %c0_i32 = arith.constant 0 : i32
    %c0_i32_0 = arith.constant 0 : i32
    %c0_i32_1 = arith.constant 0 : i32
    return %c0_i32, %c0_i32_0 : i32, i32
  }
  func.func @transform_15(%arg0: i32) -> (i32, i32) {
    %c0_i32 = arith.constant 0 : i32
    %c0_i32_0 = arith.constant 0 : i32
    return %arg0, %c0_i32 : i32, i32
  }
}

</mosaic_0001>

<llo_original>
// kernel: tpu_custom_call.1
$region0: #{tpu_custom_call.1}
  #allocation0 [shape = 'u32[]', space=smem, size = 0x4, offset = 0x4, fixed_abs, tag = 'smem constant byte address 0x4 - core index']
  #allocation1 [shape = 'u32[144,128]{1,0:T(1,128)}', space=vmem, size = 0x12000, scoped, tag = 'internal scratch']
  %s0 = inlined_call_operand.hbm [shape: f32[8,16], index: 0, kind: input, shape index: {}]
  %s1 = inlined_call_operand.hbm [shape: f32[8,16], index: 1, kind: input, shape index: {}]
  %s2 = inlined_call_operand.vmem [shape: f32[16,64], index: 2, kind: input, shape index: {}]
  %s3 = inlined_call_operand.vmem [shape: f32[16,64], index: 3, kind: input, shape index: {}]
  %s4 = inlined_call_operand.hbm [shape: f32[1,64], index: 4, kind: input, shape index: {}]
  %s5 = inlined_call_operand.hbm [shape: f32[64,128], index: 5, kind: input, shape index: {}]
  %s6 = inlined_call_operand.hbm [shape: f32[1,128], index: 6, kind: input, shape index: {}]
  %s7 = inlined_call_operand.vmem [shape: f32[128,256], index: 7, kind: input, shape index: {}]
  %s8 = inlined_call_operand.vmem [shape: f32[1,256], index: 8, kind: input, shape index: {}]
  %s9 = inlined_call_operand.hbm [shape: f32[256,128], index: 9, kind: input, shape index: {}]
  %s10 = inlined_call_operand.vmem [shape: f32[1,128], index: 10, kind: input, shape index: {}]
  %s11 = inlined_call_operand.vmem [shape: f32[128,64], index: 11, kind: input, shape index: {}]
  %s12 = inlined_call_operand.vmem [shape: f32[1,64], index: 12, kind: input, shape index: {}]
  %s13 = inlined_call_operand.vmem [shape: f32[64,8], index: 13, kind: input, shape index: {}]
  %s14 = inlined_call_operand.vmem [shape: f32[1,8], index: 14, kind: input, shape index: {}]
  %s15 = inlined_call_operand.hbm [shape: f32[8,8], index: 15, kind: output, shape index: {}]
  %s16 = sld [smem:[#allocation0]]
  $region94: #{tpu_custom_call.1} parent=0
    _
  %s18 = ssub.s32 1, %s16
  %s19 = scalar_select 0, %s18, %s16
  $region1: #{tpu_custom_call.1} parent=0
    #allocation2 [shape = 'u8[4096]{0}', space=vmem, size = 0x1000, scoped, tag = 'input window, operand 0, single buffered']
    #allocation3 [shape = 's32[1]{0}', space=sflag, size = 0x4, scoped, tag = 'scoped memory for tpu_custom_call.1']
    #allocation4 [shape = 's32[1]{0}', space=sflag, size = 0x4, scoped, tag = 'scoped memory for tpu_custom_call.1']
    #allocation5 [shape = 'u8[4096]{0}', space=vmem, size = 0x1000, scoped, tag = 'input window, operand 1, single buffered']
    #allocation6 [shape = 's32[1]{0}', space=sflag, size = 0x4, scoped, tag = 'scoped memory for tpu_custom_call.1']
    #allocation7 [shape = 'u8[512]{0}', space=vmem, size = 0x400, scoped, tag = 'input window, operand 4, single buffered']
    #allocation8 [shape = 'u8[32768]{0}', space=vmem, size = 0x8000, scoped, tag = 'input window, operand 5, single buffered']
    #allocation9 [shape = 's32[1]{0}', space=sflag, size = 0x4, scoped, tag = 'scoped memory for tpu_custom_call.1']
    #allocation10 [shape = 'u8[512]{0}', space=vmem, size = 0x400, scoped, tag = 'input window, operand 6, single buffered']
    #allocation11 [shape = 'u8[131072]{0}', space=vmem, size = 0x20000, scoped, tag = 'input window, operand 9, single buffered']
    #allocation12 [shape = 's32[1]{0}', space=sflag, size = 0x4, scoped, tag = 'scoped memory for tpu_custom_call.1']
    #allocation13 [shape = 'u8[4096]{0}', space=vmem, size = 0x1000, scoped, tag = 'output window, operand 0, single buffered']
    %20 = vsyncpa [#allocation3], 0
    %21 = vsyncpa [#allocation6], 0
    %22 = vsyncpa [#allocation9], 0
    %23 = vsyncpa [#allocation12], 0
    %24 = vsyncpa [#allocation4], 0
    // Predicated region
    $region2: #{tpu_custom_call.1} parent=1 // pred_check
      _
    $region3: #{tpu_custom_call.1} parent=1 // pred_check_branch
      %26 = sbr.rel (0) target = $region5
    $region4: #{tpu_custom_call.1} parent=1 // pred_region
      %s28 = ssub.s32 128, 128
      %29 = vsyncadd [#allocation3], %s28
      %s31 = sshll.u32 [#allocation2], 4
      %s32 = int_to_ptr.vmem [resolvable:$true] %s31
      %34 = dma.hbm_to_vmem [thread:$0]  %s0, 128, %s32, [#allocation3]
    $region5: #{tpu_custom_call.1} parent=1 // pred_fallthru
      _
    // Predicated region
    $region6: #{tpu_custom_call.1} parent=1 // pred_check
      _
    $region7: #{tpu_custom_call.1} parent=1 // pred_check_branch
      %36 = sbr.rel (0) target = $region9
    $region8: #{tpu_custom_call.1} parent=1 // pred_region
      %s38 = ssub.s32 128, 128
      %39 = vsyncadd [#allocation6], %s38
      %s41 = sshll.u32 [#allocation5], 4
      %s42 = int_to_ptr.vmem [resolvable:$true] %s41
      %44 = dma.hbm_to_vmem [thread:$0]  %s1, 128, %s42, [#allocation6]
    $region9: #{tpu_custom_call.1} parent=1 // pred_fallthru
      _
    // Predicated region
    $region10: #{tpu_custom_call.1} parent=1 // pred_check
      _
    $region11: #{tpu_custom_call.1} parent=1 // pred_check_branch
      %46 = sbr.rel (0) target = $region13
    $region12: #{tpu_custom_call.1} parent=1 // pred_region
      _
    $region13: #{tpu_custom_call.1} parent=1 // pred_fallthru
      _
    // Predicated region
    $region14: #{tpu_custom_call.1} parent=1 // pred_check
      _
    $region15: #{tpu_custom_call.1} parent=1 // pred_check_branch
      %48 = sbr.rel (0) target = $region17
    $region16: #{tpu_custom_call.1} parent=1 // pred_region
      _
    $region17: #{tpu_custom_call.1} parent=1 // pred_fallthru
      _
    // Predicated region
    $region18: #{tpu_custom_call.1} parent=1 // pred_check
      _
    $region19: #{tpu_custom_call.1} parent=1 // pred_check_branch
      %50 = sbr.rel (0) target = $region21
    $region20: #{tpu_custom_call.1} parent=1 // pred_region
      %s52 = ssub.s32 16, 16
      %53 = vsyncadd [#allocation6], %s52
      %s55 = sshll.u32 [#allocation7], 4
      %s56 = int_to_ptr.vmem [resolvable:$true] %s55
      %58 = dma.hbm_to_vmem [thread:$0]  %s4, 16, %s56, [#allocation6]
    $region21: #{tpu_custom_call.1} parent=1 // pred_fallthru
      _
    // Predicated region
    $region22: #{tpu_custom_call.1} parent=1 // pred_check
      _
    $region23: #{tpu_custom_call.1} parent=1 // pred_check_branch
      %60 = sbr.rel (0) target = $region25
    $region24: #{tpu_custom_call.1} parent=1 // pred_region
      %s62 = ssub.s32 1024, 1024
      %63 = vsyncadd [#allocation9], %s62
      %s64 = sshll.u32 [#allocation8], 4
      %s65 = int_to_ptr.vmem [resolvable:$true] %s64
      %70 = dma.hbm_to_vmem [thread:$0]  %s5, 1024, %s65, [#allocation9], 128, 128, 8
    $region25: #{tpu_custom_call.1} parent=1 // pred_fallthru
      _
    // Predicated region
    $region26: #{tpu_custom_call.1} parent=1 // pred_check
      _
    $region27: #{tpu_custom_call.1} parent=1 // pred_check_branch
      %72 = sbr.rel (0) target = $region29
    $region28: #{tpu_custom_call.1} parent=1 // pred_region
      %s74 = ssub.s32 16, 16
      %75 = vsyncadd [#allocation9], %s74
      %s77 = sshll.u32 [#allocation10], 4
      %s78 = int_to_ptr.vmem [resolvable:$true] %s77
      %80 = dma.hbm_to_vmem [thread:$0]  %s6, 16, %s78, [#allocation9]
    $region29: #{tpu_custom_call.1} parent=1 // pred_fallthru
      _
    // Predicated region
    $region30: #{tpu_custom_call.1} parent=1 // pred_check
      _
    $region31: #{tpu_custom_call.1} parent=1 // pred_check_branch
      %82 = sbr.rel (0) target = $region33
    $region32: #{tpu_custom_call.1} parent=1 // pred_region
      _
    $region33: #{tpu_custom_call.1} parent=1 // pred_fallthru
      _
    // Predicated region
    $region34: #{tpu_custom_call.1} parent=1 // pred_check
      _
    $region35: #{tpu_custom_call.1} parent=1 // pred_check_branch
      %84 = sbr.rel (0) target = $region37
    $region36: #{tpu_custom_call.1} parent=1 // pred_region
      _
    $region37: #{tpu_custom_call.1} parent=1 // pred_fallthru
      _
    // Predicated region
    $region38: #{tpu_custom_call.1} parent=1 // pred_check
      _
    $region39: #{tpu_custom_call.1} parent=1 // pred_check_branch
      %86 = sbr.rel (0) target = $region41
    $region40: #{tpu_custom_call.1} parent=1 // pred_region
      %s88 = ssub.s32 4096, 4096
      %89 = vsyncadd [#allocation12], %s88
      %s90 = sshll.u32 [#allocation11], 4
      %s91 = int_to_ptr.vmem [resolvable:$true] %s90
      %96 = dma.hbm_to_vmem [thread:$0]  %s9, 4096, %s91, [#allocation12], 128, 128, 8
    $region41: #{tpu_custom_call.1} parent=1 // pred_fallthru
      _
    // Predicated region
    $region42: #{tpu_custom_call.1} parent=1 // pred_check
      _
    $region43: #{tpu_custom_call.1} parent=1 // pred_check_branch
      %98 = sbr.rel (0) target = $region45
    $region44: #{tpu_custom_call.1} parent=1 // pred_region
      _
    $region45: #{tpu_custom_call.1} parent=1 // pred_fallthru
      _
    // Predicated region
    $region46: #{tpu_custom_call.1} parent=1 // pred_check
      _
    $region47: #{tpu_custom_call.1} parent=1 // pred_check_branch
      %100 = sbr.rel (0) target = $region49
    $region48: #{tpu_custom_call.1} parent=1 // pred_region
      _
    $region49: #{tpu_custom_call.1} parent=1 // pred_fallthru
      _
    // Predicated region
    $region50: #{tpu_custom_call.1} parent=1 // pred_check
      _
    $region51: #{tpu_custom_call.1} parent=1 // pred_check_branch
      %102 = sbr.rel (0) target = $region53
    $region52: #{tpu_custom_call.1} parent=1 // pred_region
      _
    $region53: #{tpu_custom_call.1} parent=1 // pred_fallthru
      _
    // Predicated region
    $region54: #{tpu_custom_call.1} parent=1 // pred_check
      _
    $region55: #{tpu_custom_call.1} parent=1 // pred_check_branch
      %104 = sbr.rel (0) target = $region57
    $region56: #{tpu_custom_call.1} parent=1 // pred_region
      _
    $region57: #{tpu_custom_call.1} parent=1 // pred_fallthru
      _
    // Predicated region
    $region58: #{tpu_custom_call.1} parent=1 // pred_check
      _
    $region59: #{tpu_custom_call.1} parent=1 // pred_check_branch
      %106 = sbr.rel (0) target = $region61
    $region60: #{tpu_custom_call.1} parent=1 // pred_region
      _
    $region61: #{tpu_custom_call.1} parent=1 // pred_fallthru
      _
    // Predicated region
    $region62: #{tpu_custom_call.1} parent=1 // pred_check
      _
    $region63: #{tpu_custom_call.1} parent=1 // pred_check_branch
      %108 = sbr.rel (0) target = $region65
    $region64: #{tpu_custom_call.1} parent=1 // pred_region
      %109 = dma.done [#allocation3], 128
    $region65: #{tpu_custom_call.1} parent=1 // pred_fallthru
      _
    // Predicated region
    $region66: #{tpu_custom_call.1} parent=1 // pred_check
      _
    $region67: #{tpu_custom_call.1} parent=1 // pred_check_branch
      %111 = sbr.rel (0) target = $region69
    $region68: #{tpu_custom_call.1} parent=1 // pred_region
      %112 = dma.done [#allocation6], 128
    $region69: #{tpu_custom_call.1} parent=1 // pred_fallthru
      _
    // Predicated region
    $region70: #{tpu_custom_call.1} parent=1 // pred_check
      _
    $region71: #{tpu_custom_call.1} parent=1 // pred_check_branch
      %114 = sbr.rel (0) target = $region73
    $region72: #{tpu_custom_call.1} parent=1 // pred_region
      %115 = dma.done [#allocation6], 16
    $region73: #{tpu_custom_call.1} parent=1 // pred_fallthru
      _
    // Predicated region
    $region74: #{tpu_custom_call.1} parent=1 // pred_check
      _
    $region75: #{tpu_custom_call.1} parent=1 // pred_check_branch
      %117 = sbr.rel (0) target = $region77
    $region76: #{tpu_custom_call.1} parent=1 // pred_region
      %118 = dma.done [#allocation9], 1024
    $region77: #{tpu_custom_call.1} parent=1 // pred_fallthru
      _
    // Predicated region
    $region78: #{tpu_custom_call.1} parent=1 // pred_check
      _
    $region79: #{tpu_custom_call.1} parent=1 // pred_check_branch
      %120 = sbr.rel (0) target = $region81
    $region80: #{tpu_custom_call.1} parent=1 // pred_region
      %121 = dma.done [#allocation9], 16
    $region81: #{tpu_custom_call.1} parent=1 // pred_fallthru
      _
    // Predicated region
    $region82: #{tpu_custom_call.1} parent=1 // pred_check
      _
    $region83: #{tpu_custom_call.1} parent=1 // pred_check_branch
      %123 = sbr.rel (0) target = $region85
    $region84: #{tpu_custom_call.1} parent=1 // pred_region
      %124 = dma.done [#allocation12], 4096
    $region85: #{tpu_custom_call.1} parent=1 // pred_fallthru
      _
    %v125 = vld [vmem:[%s2] sm:$0xff]
    %v126 = vld [vmem:[%s2 + $0x8] sm:$0xff]
    %v127 = vld [vmem:[%s3] sm:$0xff]
    %v128 = vld [vmem:[%s3 + $0x8] sm:$0xff]
    %v129 = vld [vmem:[#allocation2] sm:$0xff]
    %v130 = vld [vmem:[#allocation5] sm:$0xff]
    %vm131 = vcmask 130048
    %v133 = vsel %vm131, %v130, 0
    %135 = vmatprep.subr.mxu0 0.0
    %136 = vmatpush1.msra.mxu0 %v127
    %137 = vmatprep.subr.mxu0 0.0
    %138 = vmatpush1.msra.mxu0 %v128
    %139 = vmatprep.subr.mxu0 0.0
    %140 = vmatpush1.msra.mxu0 0.0
    %141 = vmatprep.subr.mxu0 0.0
    %142 = vmatpush1.msra.mxu0 0.0
    %143 = vmatprep.subr.mxu0 0.0
    %144 = vmatpush1.msra.mxu0 0.0
    %145 = vmatprep.subr.mxu0 0.0
    %146 = vmatpush1.msra.mxu0 0.0
    %147 = vmatprep.subr.mxu0 0.0
    %148 = vmatpush1.msra.mxu0 0.0
    %149 = vmatprep.subr.mxu0 0.0
    %150 = vmatpush1.msra.mxu0 0.0
    %151 = vmatprep.subr.mxu0 0.0
    %152 = vmatpush1.msra.mxu0 0.0
    %153 = vmatprep.subr.mxu0 0.0
    %154 = vmatpush1.msra.mxu0 0.0
    %155 = vmatprep.subr.mxu0 0.0
    %156 = vmatpush1.msra.mxu0 0.0
    %157 = vmatprep.subr.mxu0 0.0
    %158 = vmatpush1.msra.mxu0 0.0
    %159 = vmatprep.subr.mxu0 0.0
    %160 = vmatpush1.msra.mxu0 0.0
    %161 = vmatprep.subr.mxu0 0.0
    %162 = vmatpush1.msra.mxu0 0.0
    %163 = vmatprep.subr.mxu0 0.0
    %164 = vmatpush1.msra.mxu0 0.0
    %165 = vmatprep.subr.mxu0 0.0
    %166 = vmatpush1.msra.mxu0 0.0
    %167 = vmatprep.subr.mxu0 0.0
    %168 = vmatpush1.msra.mxu0 0.0
    %169 = vmatprep.subr.mxu0 0.0
    %170 = vmatpush1.msra.mxu0 0.0
    %171 = vmatprep.subr.mxu0 0.0
    %172 = vmatpush1.msra.mxu0 0.0
    %173 = vmatprep.subr.mxu0 0.0
    %174 = vmatpush1.msra.mxu0 0.0
    %175 = vmatprep.subr.mxu0 0.0
    %176 = vmatpush1.msra.mxu0 0.0
    %177 = vmatprep.subr.mxu0 0.0
    %178 = vmatpush1.msra.mxu0 0.0
    %179 = vmatprep.subr.mxu0 0.0
    %180 = vmatpush1.msra.mxu0 0.0
    %181 = vmatprep.subr.mxu0 0.0
    %182 = vmatpush1.msra.mxu0 0.0
    %183 = vmatprep.subr.mxu0 0.0
    %184 = vmatpush1.msra.mxu0 0.0
    %185 = vmatprep.subr.mxu0 0.0
    %186 = vmatpush1.msra.mxu0 0.0
    %187 = vmatprep.subr.mxu0 0.0
    %188 = vmatpush1.msra.mxu0 0.0
    %189 = vmatprep.subr.mxu0 0.0
    %190 = vmatpush1.msra.mxu0 0.0
    %191 = vmatprep.subr.mxu0 0.0
    %192 = vmatpush1.msra.mxu0 0.0
    %193 = vmatprep.subr.mxu0 0.0
    %194 = vmatpush1.msra.mxu0 0.0
    %195 = vmatprep.subr.mxu0 0.0
    %196 = vmatpush1.msra.mxu0 0.0
    %197 = vmatprep.subr.mxu0 0.0
    %198 = vmatpush1.msra.mxu0 0.0
    %199 = vmatprep.mubr.f32.mxu0 0.0
    %200 = vmatmul.mubr.f32.gmra.mrb[0].mxu0 %v133
    %v201 = vpop.f32.mrb[0].mxu0
    %v202 = vadd.f32 0.0, %v201
    %v203 = vpop.f32.mrb[0].mxu0
    %204 = vdwg.mxu0
    %v206 = vsel %vm131, %v129, 0
    %208 = vmatprep.subr.mxu0 0.0
    %209 = vmatpush1.msra.mxu0 %v125
    %210 = vmatprep.subr.mxu0 0.0
    %211 = vmatpush1.msra.mxu0 %v126
    %212 = vmatprep.subr.mxu0 0.0
    %213 = vmatpush1.msra.mxu0 0.0
    %214 = vmatprep.subr.mxu0 0.0
    %215 = vmatpush1.msra.mxu0 0.0
    %216 = vmatprep.subr.mxu0 0.0
    %217 = vmatpush1.msra.mxu0 0.0
    %218 = vmatprep.subr.mxu0 0.0
    %219 = vmatpush1.msra.mxu0 0.0
    %220 = vmatprep.subr.mxu0 0.0
    %221 = vmatpush1.msra.mxu0 0.0
    %222 = vmatprep.subr.mxu0 0.0
    %223 = vmatpush1.msra.mxu0 0.0
    %224 = vmatprep.subr.mxu0 0.0
    %225 = vmatpush1.msra.mxu0 0.0
    %226 = vmatprep.subr.mxu0 0.0
    %227 = vmatpush1.msra.mxu0 0.0
    %228 = vmatprep.subr.mxu0 0.0
    %229 = vmatpush1.msra.mxu0 0.0
    %230 = vmatprep.subr.mxu0 0.0
    %231 = vmatpush1.msra.mxu0 0.0
    %232 = vmatprep.subr.mxu0 0.0
    %233 = vmatpush1.msra.mxu0 0.0
    %234 = vmatprep.subr.mxu0 0.0
    %235 = vmatpush1.msra.mxu0 0.0
    %236 = vmatprep.subr.mxu0 0.0
    %237 = vmatpush1.msra.mxu0 0.0
    %238 = vmatprep.subr.mxu0 0.0
    %239 = vmatpush1.msra.mxu0 0.0
    %240 = vmatprep.subr.mxu0 0.0
    %241 = vmatpush1.msra.mxu0 0.0
    %242 = vmatprep.subr.mxu0 0.0
    %243 = vmatpush1.msra.mxu0 0.0
    %244 = vmatprep.subr.mxu0 0.0
    %245 = vmatpush1.msra.mxu0 0.0
    %246 = vmatprep.subr.mxu0 0.0
    %247 = vmatpush1.msra.mxu0 0.0
    %248 = vmatprep.subr.mxu0 0.0
    %249 = vmatpush1.msra.mxu0 0.0
    %250 = vmatprep.subr.mxu0 0.0
    %251 = vmatpush1.msra.mxu0 0.0
    %252 = vmatprep.subr.mxu0 0.0
    %253 = vmatpush1.msra.mxu0 0.0
    %254 = vmatprep.subr.mxu0 0.0
    %255 = vmatpush1.msra.mxu0 0.0
    %256 = vmatprep.subr.mxu0 0.0
    %257 = vmatpush1.msra.mxu0 0.0
    %258 = vmatprep.subr.mxu0 0.0
    %259 = vmatpush1.msra.mxu0 0.0
    %260 = vmatprep.subr.mxu0 0.0
    %261 = vmatpush1.msra.mxu0 0.0
    %262 = vmatprep.subr.mxu0 0.0
    %263 = vmatpush1.msra.mxu0 0.0
    %264 = vmatprep.subr.mxu0 0.0
    %265 = vmatpush1.msra.mxu0 0.0
    %266 = vmatprep.subr.mxu0 0.0
    %267 = vmatpush1.msra.mxu0 0.0
    %268 = vmatprep.subr.mxu0 0.0
    %269 = vmatpush1.msra.mxu0 0.0
    %270 = vmatprep.subr.mxu0 0.0
    %271 = vmatpush1.msra.mxu0 0.0
    %272 = vmatprep.mubr.f32.mxu0 0.0
    %273 = vmatmul.mubr.f32.gmra.mrb[0].mxu0 %v206
    %v274 = vpop.f32.mrb[0].mxu0
    %v275 = vadd.f32 %v202, %v274
    %v276 = vpop.f32.mrb[0].mxu0
    %277 = vdwg.mxu0
    %v278 = vld [vmem:[#allocation7] sm:$0x1]
    %v280 = vlaneseq
    %v281 = vshrl.u32 %v280, 7
    %v282 = vsub.s32 0, %v281
    %v283 = vrot.slane %v278, %v282
    %v285 = vadd.f32 %v275, %v283
    %v286 = vmax.f32 %v285, 0.0
    %v287 = vld [vmem:[#allocation8] sm:$0xff]
    %v288 = vld [vmem:[#allocation8 + $0x8] sm:$0xff]
    %v289 = vld [vmem:[#allocation8 + $0x10] sm:$0xff]
    %v290 = vld [vmem:[#allocation8 + $0x18] sm:$0xff]
    %v291 = vld [vmem:[#allocation8 + $0x20] sm:$0xff]
    %v292 = vld [vmem:[#allocation8 + $0x28] sm:$0xff]
    %v293 = vld [vmem:[#allocation8 + $0x30] sm:$0xff]
    %v294 = vld [vmem:[#allocation8 + $0x38] sm:$0xff]
    %v295 = vld [vmem:[#allocation10] sm:$0x1]
    %v297 = vlaneseq
    %v298 = vshrl.u32 %v297, 7
    %v299 = vsub.s32 0, %v298
    %v300 = vrot.slane %v295, %v299
    %vm302 = vcmask 523264
    %v304 = vsel %vm302, %v286, 0
    %306 = vmatprep.subr.mxu0 0.0
    %307 = vmatpush1.msra.mxu0 %v287
    %308 = vmatprep.subr.mxu0 0.0
    %309 = vmatpush1.msra.mxu0 %v288
    %310 = vmatprep.subr.mxu0 0.0
    %311 = vmatpush1.msra.mxu0 %v289
    %312 = vmatprep.subr.mxu0 0.0
    %313 = vmatpush1.msra.mxu0 %v290
    %314 = vmatprep.subr.mxu0 0.0
    %315 = vmatpush1.msra.mxu0 %v291
    %316 = vmatprep.subr.mxu0 0.0
    %317 = vmatpush1.msra.mxu0 %v292
    %318 = vmatprep.subr.mxu0 0.0
    %319 = vmatpush1.msra.mxu0 %v293
    %320 = vmatprep.subr.mxu0 0.0
    %321 = vmatpush1.msra.mxu0 %v294
    %322 = vmatprep.subr.mxu0 0.0
    %323 = vmatpush1.msra.mxu0 0.0
    %324 = vmatprep.subr.mxu0 0.0
    %325 = vmatpush1.msra.mxu0 0.0
    %326 = vmatprep.subr.mxu0 0.0
    %327 = vmatpush1.msra.mxu0 0.0
    %328 = vmatprep.subr.mxu0 0.0
    %329 = vmatpush1.msra.mxu0 0.0
    %330 = vmatprep.subr.mxu0 0.0
    %331 = vmatpush1.msra.mxu0 0.0
    %332 = vmatprep.subr.mxu0 0.0
    %333 = vmatpush1.msra.mxu0 0.0
    %334 = vmatprep.subr.mxu0 0.0
    %335 = vmatpush1.msra.mxu0 0.0
    %336 = vmatprep.subr.mxu0 0.0
    %337 = vmatpush1.msra.mxu0 0.0
    %338 = vmatprep.subr.mxu0 0.0
    %339 = vmatpush1.msra.mxu0 0.0
    %340 = vmatprep.subr.mxu0 0.0
    %341 = vmatpush1.msra.mxu0 0.0
    %342 = vmatprep.subr.mxu0 0.0
    %343 = vmatpush1.msra.mxu0 0.0
    %344 = vmatprep.subr.mxu0 0.0
    %345 = vmatpush1.msra.mxu0 0.0
    %346 = vmatprep.subr.mxu0 0.0
    %347 = vmatpush1.msra.mxu0 0.0
    %348 = vmatprep.subr.mxu0 0.0
    %349 = vmatpush1.msra.mxu0 0.0
    %350 = vmatprep.subr.mxu0 0.0
    %351 = vmatpush1.msra.mxu0 0.0
    %352 = vmatprep.subr.mxu0 0.0
    %353 = vmatpush1.msra.mxu0 0.0
    %354 = vmatprep.subr.mxu0 0.0
    %355 = vmatpush1.msra.mxu0 0.0
    %356 = vmatprep.subr.mxu0 0.0
    %357 = vmatpush1.msra.mxu0 0.0
    %358 = vmatprep.subr.mxu0 0.0
    %359 = vmatpush1.msra.mxu0 0.0
    %360 = vmatprep.subr.mxu0 0.0
    %361 = vmatpush1.msra.mxu0 0.0
    %362 = vmatprep.subr.mxu0 0.0
    %363 = vmatpush1.msra.mxu0 0.0
    %364 = vmatprep.subr.mxu0 0.0
    %365 = vmatpush1.msra.mxu0 0.0
    %366 = vmatprep.subr.mxu0 0.0
    %367 = vmatpush1.msra.mxu0 0.0
    %368 = vmatprep.subr.mxu0 0.0
    %369 = vmatpush1.msra.mxu0 0.0
    %370 = vmatprep.mubr.f32.mxu0 0.0
    %371 = vmatmul.mubr.f32.gmra.mrb[0].mxu0 %v304
    %v372 = vpop.f32.mrb[0].mxu0
    %v373 = vadd.f32 %v300, %v372
    %v374 = vpop.f32.mrb[0].mxu0
    %375 = vdwg.mxu0
    %v376 = vmax.f32 %v373, 0.0
    %v377 = vld [vmem:[%s7] sm:$0xff]
    %v378 = vld [vmem:[%s7 + $0x8] sm:$0xff]
    %v379 = vld [vmem:[%s7 + $0x10] sm:$0xff]
    %v380 = vld [vmem:[%s7 + $0x18] sm:$0xff]
    %v381 = vld [vmem:[%s7 + $0x20] sm:$0xff]
    %v382 = vld [vmem:[%s7 + $0x28] sm:$0xff]
    %v383 = vld [vmem:[%s7 + $0x30] sm:$0xff]
    %v384 = vld [vmem:[%s7 + $0x38] sm:$0xff]
    %v385 = vld [vmem:[%s7 + $0x40] sm:$0xff]
    %v386 = vld [vmem:[%s7 + $0x48] sm:$0xff]
    %v387 = vld [vmem:[%s7 + $0x50] sm:$0xff]
    %v388 = vld [vmem:[%s7 + $0x58] sm:$0xff]
    %v389 = vld [vmem:[%s7 + $0x60] sm:$0xff]
    %v390 = vld [vmem:[%s7 + $0x68] sm:$0xff]
    %v391 = vld [vmem:[%s7 + $0x70] sm:$0xff]
    %v392 = vld [vmem:[%s7 + $0x78] sm:$0xff]
    %v393 = vld [vmem:[%s7 + $0x80] sm:$0xff]
    %v394 = vld [vmem:[%s7 + $0x88] sm:$0xff]
    %v395 = vld [vmem:[%s7 + $0x90] sm:$0xff]
    %v396 = vld [vmem:[%s7 + $0x98] sm:$0xff]
    %v397 = vld [vmem:[%s7 + $0xa0] sm:$0xff]
    %v398 = vld [vmem:[%s7 + $0xa8] sm:$0xff]
    %v399 = vld [vmem:[%s7 + $0xb0] sm:$0xff]
    %v400 = vld [vmem:[%s7 + $0xb8] sm:$0xff]
    %v401 = vld [vmem:[%s7 + $0xc0] sm:$0xff]
    %v402 = vld [vmem:[%s7 + $0xc8] sm:$0xff]
    %v403 = vld [vmem:[%s7 + $0xd0] sm:$0xff]
    %v404 = vld [vmem:[%s7 + $0xd8] sm:$0xff]
    %v405 = vld [vmem:[%s7 + $0xe0] sm:$0xff]
    %v406 = vld [vmem:[%s7 + $0xe8] sm:$0xff]
    %v407 = vld [vmem:[%s7 + $0xf0] sm:$0xff]
    %v408 = vld [vmem:[%s7 + $0xf8] sm:$0xff]
    %v409 = vld [vmem:[%s8] sm:$0x3]
    %v411 = vlaneseq
    %v412 = vshrl.u32 %v411, 7
    %v413 = vsub.s32 0, %v412
    %v414 = vrot.slane %v409, %v413
    %v415 = vlaneseq
    %v416 = vshrl.u32 %v415, 7
    %v417 = vsub.s32 1, %v416
    %v418 = vrot.slane %v409, %v417
    %421 = vmatprep.subr.mxu0 %v378
    %422 = vmatpush1.msra.mxu0 %v377
    %423 = vmatprep.subr.mxu0 %v380
    %424 = vmatpush1.msra.mxu0 %v379
    %425 = vmatprep.subr.mxu0 %v382
    %426 = vmatpush1.msra.mxu0 %v381
    %427 = vmatprep.subr.mxu0 %v384
    %428 = vmatpush1.msra.mxu0 %v383
    %429 = vmatprep.subr.mxu0 %v386
    %430 = vmatpush1.msra.mxu0 %v385
    %431 = vmatprep.subr.mxu0 %v388
    %432 = vmatpush1.msra.mxu0 %v387
    %433 = vmatprep.subr.mxu0 %v390
    %434 = vmatpush1.msra.mxu0 %v389
    %435 = vmatprep.subr.mxu0 %v392
    %436 = vmatpush1.msra.mxu0 %v391
    %437 = vmatprep.subr.mxu0 %v394
    %438 = vmatpush1.msra.mxu0 %v393
    %439 = vmatprep.subr.mxu0 %v396
    %440 = vmatpush1.msra.mxu0 %v395
    %441 = vmatprep.subr.mxu0 %v398
    %442 = vmatpush1.msra.mxu0 %v397
    %443 = vmatprep.subr.mxu0 %v400
    %444 = vmatpush1.msra.mxu0 %v399
    %445 = vmatprep.subr.mxu0 %v402
    %446 = vmatpush1.msra.mxu0 %v401
    %447 = vmatprep.subr.mxu0 %v404
    %448 = vmatpush1.msra.mxu0 %v403
    %449 = vmatprep.subr.mxu0 %v406
    %450 = vmatpush1.msra.mxu0 %v405
    %451 = vmatprep.subr.mxu0 %v408
    %452 = vmatpush1.msra.mxu0 %v407
    %453 = vmatprep.subr.mxu0 0.0
    %454 = vmatpush1.msra.mxu0 0.0
    %455 = vmatprep.subr.mxu0 0.0
    %456 = vmatpush1.msra.mxu0 0.0
    %457 = vmatprep.subr.mxu0 0.0
    %458 = vmatpush1.msra.mxu0 0.0
    %459 = vmatprep.subr.mxu0 0.0
    %460 = vmatpush1.msra.mxu0 0.0
    %461 = vmatprep.subr.mxu0 0.0
    %462 = vmatpush1.msra.mxu0 0.0
    %463 = vmatprep.subr.mxu0 0.0
    %464 = vmatpush1.msra.mxu0 0.0
    %465 = vmatprep.subr.mxu0 0.0
    %466 = vmatpush1.msra.mxu0 0.0
    %467 = vmatprep.subr.mxu0 0.0
    %468 = vmatpush1.msra.mxu0 0.0
    %469 = vmatprep.subr.mxu0 0.0
    %470 = vmatpush1.msra.mxu0 0.0
    %471 = vmatprep.subr.mxu0 0.0
    %472 = vmatpush1.msra.mxu0 0.0
    %473 = vmatprep.subr.mxu0 0.0
    %474 = vmatpush1.msra.mxu0 0.0
    %475 = vmatprep.subr.mxu0 0.0
    %476 = vmatpush1.msra.mxu0 0.0
    %477 = vmatprep.subr.mxu0 0.0
    %478 = vmatpush1.msra.mxu0 0.0
    %479 = vmatprep.subr.mxu0 0.0
    %480 = vmatpush1.msra.mxu0 0.0
    %481 = vmatprep.subr.mxu0 0.0
    %482 = vmatpush1.msra.mxu0 0.0
    %483 = vmatprep.subr.mxu0 0.0
    %484 = vmatpush1.msra.mxu0 0.0
    %485 = vmatprep.mubr.f32.mxu0 0.0
    %486 = vmatmul.mubr.f32.gmra.mrb[0].mxu0 %v376
    %v487 = vpop.f32.mrb[0].mxu0
    %v488 = vadd.f32 %v414, %v487
    %v489 = vpop.f32.mrb[0].mxu0
    %v490 = vadd.f32 %v418, %v489
    %491 = vdwg.mxu0
    %v492 = vmax.f32 %v488, 0.0
    %v493 = vmax.f32 %v490, 0.0
    %v494 = vld [vmem:[#allocation11] sm:$0xff]
    %v495 = vld [vmem:[#allocation11 + $0x8] sm:$0xff]
    %v496 = vld [vmem:[#allocation11 + $0x10] sm:$0xff]
    %v497 = vld [vmem:[#allocation11 + $0x18] sm:$0xff]
    %v498 = vld [vmem:[#allocation11 + $0x20] sm:$0xff]
    %v499 = vld [vmem:[#allocation11 + $0x28] sm:$0xff]
    %v500 = vld [vmem:[#allocation11 + $0x30] sm:$0xff]
    %v501 = vld [vmem:[#allocation11 + $0x38] sm:$0xff]
    %v502 = vld [vmem:[#allocation11 + $0x40] sm:$0xff]
    %v503 = vld [vmem:[#allocation11 + $0x48] sm:$0xff]
    %v504 = vld [vmem:[#allocation11 + $0x50] sm:$0xff]
    %v505 = vld [vmem:[#allocation11 + $0x58] sm:$0xff]
    %v506 = vld [vmem:[#allocation11 + $0x60] sm:$0xff]
    %v507 = vld [vmem:[#allocation11 + $0x68] sm:$0xff]
    %v508 = vld [vmem:[#allocation11 + $0x70] sm:$0xff]
    %v509 = vld [vmem:[#allocation11 + $0x78] sm:$0xff]
    %v510 = vld [vmem:[#allocation11 + $0x80] sm:$0xff]
    %v511 = vld [vmem:[#allocation11 + $0x88] sm:$0xff]
    %v512 = vld [vmem:[#allocation11 + $0x90] sm:$0xff]
    %v513 = vld [vmem:[#allocation11 + $0x98] sm:$0xff]
    %v514 = vld [vmem:[#allocation11 + $0xa0] sm:$0xff]
    %v515 = vld [vmem:[#allocation11 + $0xa8] sm:$0xff]
    %v516 = vld [vmem:[#allocation11 + $0xb0] sm:$0xff]
    %v517 = vld [vmem:[#allocation11 + $0xb8] sm:$0xff]
    %v518 = vld [vmem:[#allocation11 + $0xc0] sm:$0xff]
    %v519 = vld [vmem:[#allocation11 + $0xc8] sm:$0xff]
    %v520 = vld [vmem:[#allocation11 + $0xd0] sm:$0xff]
    %v521 = vld [vmem:[#allocation11 + $0xd8] sm:$0xff]
    %v522 = vld [vmem:[#allocation11 + $0xe0] sm:$0xff]
    %v523 = vld [vmem:[#allocation11 + $0xe8] sm:$0xff]
    %v524 = vld [vmem:[#allocation11 + $0xf0] sm:$0xff]
    %v525 = vld [vmem:[#allocation11 + $0xf8] sm:$0xff]
    %v526 = vld [vmem:[%s10] sm:$0x1]
    %v528 = vlaneseq
    %v529 = vshrl.u32 %v528, 7
    %v530 = vsub.s32 0, %v529
    %v531 = vrot.slane %v526, %v530
    %533 = vmatprep.subr.mxu0 0.0
    %534 = vmatpush1.msra.mxu0 %v494
    %535 = vmatprep.subr.mxu0 0.0
    %536 = vmatpush1.msra.mxu0 %v495
    %537 = vmatprep.subr.mxu0 0.0
    %538 = vmatpush1.msra.mxu0 %v496
    %539 = vmatprep.subr.mxu0 0.0
    %540 = vmatpush1.msra.mxu0 %v497
    %541 = vmatprep.subr.mxu0 0.0
    %542 = vmatpush1.msra.mxu0 %v498
    %543 = vmatprep.subr.mxu0 0.0
    %544 = vmatpush1.msra.mxu0 %v499
    %545 = vmatprep.subr.mxu0 0.0
    %546 = vmatpush1.msra.mxu0 %v500
    %547 = vmatprep.subr.mxu0 0.0
    %548 = vmatpush1.msra.mxu0 %v501
    %549 = vmatprep.subr.mxu0 0.0
    %550 = vmatpush1.msra.mxu0 %v502
    %551 = vmatprep.subr.mxu0 0.0
    %552 = vmatpush1.msra.mxu0 %v503
    %553 = vmatprep.subr.mxu0 0.0
    %554 = vmatpush1.msra.mxu0 %v504
    %555 = vmatprep.subr.mxu0 0.0
    %556 = vmatpush1.msra.mxu0 %v505
    %557 = vmatprep.subr.mxu0 0.0
    %558 = vmatpush1.msra.mxu0 %v506
    %559 = vmatprep.subr.mxu0 0.0
    %560 = vmatpush1.msra.mxu0 %v507
    %561 = vmatprep.subr.mxu0 0.0
    %562 = vmatpush1.msra.mxu0 %v508
    %563 = vmatprep.subr.mxu0 0.0
    %564 = vmatpush1.msra.mxu0 %v509
    %565 = vmatprep.subr.mxu0 0.0
    %566 = vmatpush1.msra.mxu0 %v510
    %567 = vmatprep.subr.mxu0 0.0
    %568 = vmatpush1.msra.mxu0 %v511
    %569 = vmatprep.subr.mxu0 0.0
    %570 = vmatpush1.msra.mxu0 %v512
    %571 = vmatprep.subr.mxu0 0.0
    %572 = vmatpush1.msra.mxu0 %v513
    %573 = vmatprep.subr.mxu0 0.0
    %574 = vmatpush1.msra.mxu0 %v514
    %575 = vmatprep.subr.mxu0 0.0
    %576 = vmatpush1.msra.mxu0 %v515
    %577 = vmatprep.subr.mxu0 0.0
    %578 = vmatpush1.msra.mxu0 %v516
    %579 = vmatprep.subr.mxu0 0.0
    %580 = vmatpush1.msra.mxu0 %v517
    %581 = vmatprep.subr.mxu0 0.0
    %582 = vmatpush1.msra.mxu0 %v518
    %583 = vmatprep.subr.mxu0 0.0
    %584 = vmatpush1.msra.mxu0 %v519
    %585 = vmatprep.subr.mxu0 0.0
    %586 = vmatpush1.msra.mxu0 %v520
    %587 = vmatprep.subr.mxu0 0.0
    %588 = vmatpush1.msra.mxu0 %v521
    %589 = vmatprep.subr.mxu0 0.0
    %590 = vmatpush1.msra.mxu0 %v522
    %591 = vmatprep.subr.mxu0 0.0
    %592 = vmatpush1.msra.mxu0 %v523
    %593 = vmatprep.subr.mxu0 0.0
    %594 = vmatpush1.msra.mxu0 %v524
    %595 = vmatprep.subr.mxu0 0.0
    %596 = vmatpush1.msra.mxu0 %v525
    %597 = vmatprep.mubr.f32.mxu0 %v493
    %598 = vmatmul.mubr.f32.gmra.mrb[0].mxu0 %v492
    %v599 = vpop.f32.mrb[0].mxu0
    %v600 = vadd.f32 %v531, %v599
    %v601 = vpop.f32.mrb[0].mxu0
    %602 = vdwg.mxu0
    %v603 = vmax.f32 %v600, 0.0
    %v604 = vld [vmem:[%s11] sm:$0xff]
    %v605 = vld [vmem:[%s11 + $0x8] sm:$0xff]
    %v606 = vld [vmem:[%s11 + $0x10] sm:$0xff]
    %v607 = vld [vmem:[%s11 + $0x18] sm:$0xff]
    %v608 = vld [vmem:[%s11 + $0x20] sm:$0xff]
    %v609 = vld [vmem:[%s11 + $0x28] sm:$0xff]
    %v610 = vld [vmem:[%s11 + $0x30] sm:$0xff]
    %v611 = vld [vmem:[%s11 + $0x38] sm:$0xff]
    %v612 = vld [vmem:[%s11 + $0x40] sm:$0xff]
    %v613 = vld [vmem:[%s11 + $0x48] sm:$0xff]
    %v614 = vld [vmem:[%s11 + $0x50] sm:$0xff]
    %v615 = vld [vmem:[%s11 + $0x58] sm:$0xff]
    %v616 = vld [vmem:[%s11 + $0x60] sm:$0xff]
    %v617 = vld [vmem:[%s11 + $0x68] sm:$0xff]
    %v618 = vld [vmem:[%s11 + $0x70] sm:$0xff]
    %v619 = vld [vmem:[%s11 + $0x78] sm:$0xff]
    %v620 = vld [vmem:[%s12] sm:$0x1]
    %v622 = vlaneseq
    %v623 = vshrl.u32 %v622, 7
    %v624 = vsub.s32 0, %v623
    %v625 = vrot.slane %v620, %v624
    %627 = vmatprep.subr.mxu0 0.0
    %628 = vmatpush1.msra.mxu0 %v604
    %629 = vmatprep.subr.mxu0 0.0
    %630 = vmatpush1.msra.mxu0 %v605
    %631 = vmatprep.subr.mxu0 0.0
    %632 = vmatpush1.msra.mxu0 %v606
    %633 = vmatprep.subr.mxu0 0.0
    %634 = vmatpush1.msra.mxu0 %v607
    %635 = vmatprep.subr.mxu0 0.0
    %636 = vmatpush1.msra.mxu0 %v608
    %637 = vmatprep.subr.mxu0 0.0
    %638 = vmatpush1.msra.mxu0 %v609
    %639 = vmatprep.subr.mxu0 0.0
    %640 = vmatpush1.msra.mxu0 %v610
    %641 = vmatprep.subr.mxu0 0.0
    %642 = vmatpush1.msra.mxu0 %v611
    %643 = vmatprep.subr.mxu0 0.0
    %644 = vmatpush1.msra.mxu0 %v612
    %645 = vmatprep.subr.mxu0 0.0
    %646 = vmatpush1.msra.mxu0 %v613
    %647 = vmatprep.subr.mxu0 0.0
    %648 = vmatpush1.msra.mxu0 %v614
    %649 = vmatprep.subr.mxu0 0.0
    %650 = vmatpush1.msra.mxu0 %v615
    %651 = vmatprep.subr.mxu0 0.0
    %652 = vmatpush1.msra.mxu0 %v616
    %653 = vmatprep.subr.mxu0 0.0
    %654 = vmatpush1.msra.mxu0 %v617
    %655 = vmatprep.subr.mxu0 0.0
    %656 = vmatpush1.msra.mxu0 %v618
    %657 = vmatprep.subr.mxu0 0.0
    %658 = vmatpush1.msra.mxu0 %v619
    %659 = vmatprep.subr.mxu0 0.0
    %660 = vmatpush1.msra.mxu0 0.0
    %661 = vmatprep.subr.mxu0 0.0
    %662 = vmatpush1.msra.mxu0 0.0
    %663 = vmatprep.subr.mxu0 0.0
    %664 = vmatpush1.msra.mxu0 0.0
    %665 = vmatprep.subr.mxu0 0.0
    %666 = vmatpush1.msra.mxu0 0.0
    %667 = vmatprep.subr.mxu0 0.0
    %668 = vmatpush1.msra.mxu0 0.0
    %669 = vmatprep.subr.mxu0 0.0
    %670 = vmatpush1.msra.mxu0 0.0
    %671 = vmatprep.subr.mxu0 0.0
    %672 = vmatpush1.msra.mxu0 0.0
    %673 = vmatprep.subr.mxu0 0.0
    %674 = vmatpush1.msra.mxu0 0.0
    %675 = vmatprep.subr.mxu0 0.0
    %676 = vmatpush1.msra.mxu0 0.0
    %677 = vmatprep.subr.mxu0 0.0
    %678 = vmatpush1.msra.mxu0 0.0
    %679 = vmatprep.subr.mxu0 0.0
    %680 = vmatpush1.msra.mxu0 0.0
    %681 = vmatprep.subr.mxu0 0.0
    %682 = vmatpush1.msra.mxu0 0.0
    %683 = vmatprep.subr.mxu0 0.0
    %684 = vmatpush1.msra.mxu0 0.0
    %685 = vmatprep.subr.mxu0 0.0
    %686 = vmatpush1.msra.mxu0 0.0
    %687 = vmatprep.subr.mxu0 0.0
    %688 = vmatpush1.msra.mxu0 0.0
    %689 = vmatprep.subr.mxu0 0.0
    %690 = vmatpush1.msra.mxu0 0.0
    %691 = vmatprep.mubr.f32.mxu0 0.0
    %692 = vmatmul.mubr.f32.gmra.mrb[0].mxu0 %v603
    %v693 = vpop.f32.mrb[0].mxu0
    %v694 = vadd.f32 %v625, %v693
    %v695 = vpop.f32.mrb[0].mxu0
    %696 = vdwg.mxu0
    %v697 = vmax.f32 %v694, 0.0
    %v698 = vld [vmem:[%s13] sm:$0xff]
    %v699 = vld [vmem:[%s13 + $0x8] sm:$0xff]
    %v700 = vld [vmem:[%s13 + $0x10] sm:$0xff]
    %v701 = vld [vmem:[%s13 + $0x18] sm:$0xff]
    %v702 = vld [vmem:[%s13 + $0x20] sm:$0xff]
    %v703 = vld [vmem:[%s13 + $0x28] sm:$0xff]
    %v704 = vld [vmem:[%s13 + $0x30] sm:$0xff]
    %v705 = vld [vmem:[%s13 + $0x38] sm:$0xff]
    %v706 = vld [vmem:[%s14] sm:$0x1]
    %v708 = vlaneseq
    %v709 = vshrl.u32 %v708, 7
    %v710 = vsub.s32 0, %v709
    %v711 = vrot.slane %v706, %v710
    %v714 = vsel %vm302, %v697, 0
    %716 = vmatprep.subr.mxu0 0.0
    %717 = vmatpush1.msra.mxu0 %v698
    %718 = vmatprep.subr.mxu0 0.0
    %719 = vmatpush1.msra.mxu0 %v699
    %720 = vmatprep.subr.mxu0 0.0
    %721 = vmatpush1.msra.mxu0 %v700
    %722 = vmatprep.subr.mxu0 0.0
    %723 = vmatpush1.msra.mxu0 %v701
    %724 = vmatprep.subr.mxu0 0.0
    %725 = vmatpush1.msra.mxu0 %v702
    %726 = vmatprep.subr.mxu0 0.0
    %727 = vmatpush1.msra.mxu0 %v703
    %728 = vmatprep.subr.mxu0 0.0
    %729 = vmatpush1.msra.mxu0 %v704
    %730 = vmatprep.subr.mxu0 0.0
    %731 = vmatpush1.msra.mxu0 %v705
    %732 = vmatprep.subr.mxu0 0.0
    %733 = vmatpush1.msra.mxu0 0.0
    %734 = vmatprep.subr.mxu0 0.0
    %735 = vmatpush1.msra.mxu0 0.0
    %736 = vmatprep.subr.mxu0 0.0
    %737 = vmatpush1.msra.mxu0 0.0
    %738 = vmatprep.subr.mxu0 0.0
    %739 = vmatpush1.msra.mxu0 0.0
    %740 = vmatprep.subr.mxu0 0.0
    %741 = vmatpush1.msra.mxu0 0.0
    %742 = vmatprep.subr.mxu0 0.0
    %743 = vmatpush1.msra.mxu0 0.0
    %744 = vmatprep.subr.mxu0 0.0
    %745 = vmatpush1.msra.mxu0 0.0
    %746 = vmatprep.subr.mxu0 0.0
    %747 = vmatpush1.msra.mxu0 0.0
    %748 = vmatprep.subr.mxu0 0.0
    %749 = vmatpush1.msra.mxu0 0.0
    %750 = vmatprep.subr.mxu0 0.0
    %751 = vmatpush1.msra.mxu0 0.0
    %752 = vmatprep.subr.mxu0 0.0
    %753 = vmatpush1.msra.mxu0 0.0
    %754 = vmatprep.subr.mxu0 0.0
    %755 = vmatpush1.msra.mxu0 0.0
    %756 = vmatprep.subr.mxu0 0.0
    %757 = vmatpush1.msra.mxu0 0.0
    %758 = vmatprep.subr.mxu0 0.0
    %759 = vmatpush1.msra.mxu0 0.0
    %760 = vmatprep.subr.mxu0 0.0
    %761 = vmatpush1.msra.mxu0 0.0
    %762 = vmatprep.subr.mxu0 0.0
    %763 = vmatpush1.msra.mxu0 0.0
    %764 = vmatprep.subr.mxu0 0.0
    %765 = vmatpush1.msra.mxu0 0.0
    %766 = vmatprep.subr.mxu0 0.0
    %767 = vmatpush1.msra.mxu0 0.0
    %768 = vmatprep.subr.mxu0 0.0
    %769 = vmatpush1.msra.mxu0 0.0
    %770 = vmatprep.subr.mxu0 0.0
    %771 = vmatpush1.msra.mxu0 0.0
    %772 = vmatprep.subr.mxu0 0.0
    %773 = vmatpush1.msra.mxu0 0.0
    %774 = vmatprep.subr.mxu0 0.0
    %775 = vmatpush1.msra.mxu0 0.0
    %776 = vmatprep.subr.mxu0 0.0
    %777 = vmatpush1.msra.mxu0 0.0
    %778 = vmatprep.subr.mxu0 0.0
    %779 = vmatpush1.msra.mxu0 0.0
    %780 = vmatprep.mubr.f32.mxu0 0.0
    %781 = vmatmul.mubr.f32.gmra.mrb[0].mxu0 %v714
    %v782 = vpop.f32.mrb[0].mxu0
    %v783 = vadd.f32 %v711, %v782
    %v784 = vpop.f32.mrb[0].mxu0
    %785 = vdwg.mxu0
    %vm786 = vcmask 64512
    %787 = vst.msk [vmem:[#allocation13] sm:$0xff] %vm786, %v783
    // Predicated region
    $region86: #{tpu_custom_call.1} parent=1 // pred_check
      _
    $region87: #{tpu_custom_call.1} parent=1 // pred_check_branch
      %789 = sbr.rel (0) target = $region89
    $region88: #{tpu_custom_call.1} parent=1 // pred_region
      %s791 = ssub.s32 128, 128
      %792 = vsyncadd [#allocation4], %s791
      %s794 = sshll.u32 [#allocation13], 4
      %s795 = int_to_ptr.vmem [resolvable:$true] %s794
      %797 = dma.vmem_to_hbm [thread:$0]  %s795, 128, %s15, [#allocation4]
    $region89: #{tpu_custom_call.1} parent=1 // pred_fallthru
      _
    // Predicated region
    $region90: #{tpu_custom_call.1} parent=1 // pred_check
      _
    $region91: #{tpu_custom_call.1} parent=1 // pred_check_branch
      %799 = sbr.rel (0) target = $region93
    $region92: #{tpu_custom_call.1} parent=1 // pred_region
      %800 = dma.done [#allocation4], 128
    $region93: #{tpu_custom_call.1} parent=1 // pred_fallthru
      _
    %801 = vsyncpa [#allocation3], 1
    %802 = vsyncpa [#allocation6], 1
    %803 = vsyncpa [#allocation9], 1
    %804 = vsyncpa [#allocation12], 1
    %805 = vsyncpa [#allocation4], 1

// kernel: tpu_custom_call.1
$region0: #{tpu_custom_call.1}
  #allocation0 [shape = 'u32[]', space=smem, size = 0x4, offset = 0x4, fixed_abs, tag = 'smem constant byte address 0x4 - core index']
  #allocation1 [shape = 'u32[144,128]{1,0:T(1,128)}', space=vmem, size = 0x12000, scoped, tag = 'internal scratch']
  %s0 = inlined_call_operand.hbm [shape: f32[8,16], index: 0, kind: input, shape index: {}]
  %s1 = inlined_call_operand.hbm [shape: f32[8,16], index: 1, kind: input, shape index: {}]
  %s2 = inlined_call_operand.vmem [shape: f32[16,64], index: 2, kind: input, shape index: {}]
  %s3 = inlined_call_operand.vmem [shape: f32[16,64], index: 3, kind: input, shape index: {}]
  %s4 = inlined_call_operand.hbm [shape: f32[1,64], index: 4, kind: input, shape index: {}]
  %s5 = inlined_call_operand.hbm [shape: f32[64,128], index: 5, kind: input, shape index: {}]
  %s6 = inlined_call_operand.hbm [shape: f32[1,128], index: 6, kind: input, shape index: {}]
  %s7 = inlined_call_operand.vmem [shape: f32[128,256], index: 7, kind: input, shape index: {}]
  %s8 = inlined_call_operand.vmem [shape: f32[1,256], index: 8, kind: input, shape index: {}]
  %s9 = inlined_call_operand.hbm [shape: f32[256,128], index: 9, kind: input, shape index: {}]
  %s10 = inlined_call_operand.vmem [shape: f32[1,128], index: 10, kind: input, shape index: {}]
  %s11 = inlined_call_operand.vmem [shape: f32[128,64], index: 11, kind: input, shape index: {}]
  %s12 = inlined_call_operand.vmem [shape: f32[1,64], index: 12, kind: input, shape index: {}]
  %s13 = inlined_call_operand.vmem [shape: f32[64,8], index: 13, kind: input, shape index: {}]
  %s14 = inlined_call_operand.vmem [shape: f32[1,8], index: 14, kind: input, shape index: {}]
  %s15 = inlined_call_operand.hbm [shape: f32[8,8], index: 15, kind: output, shape index: {}]
  %s16 = sld [smem:[#allocation0]]
  $region94: #{tpu_custom_call.1} parent=0
    _
  %s18 = ssub.s32 1, %s16
  %s19 = scalar_select 0, %s18, %s16
  $region1: #{tpu_custom_call.1} parent=0
    #allocation2 [shape = 'u8[4096]{0}', space=vmem, size = 0x1000, scoped, tag = 'input window, operand 0, single buffered']
    #allocation3 [shape = 's32[1]{0}', space=sflag, size = 0x4, scoped, tag = 'scoped memory for tpu_custom_call.1']
    #allocation4 [shape = 's32[1]{0}', space=sflag, size = 0x4, scoped, tag = 'scoped memory for tpu_custom_call.1']
    #allocation5 [shape = 'u8[4096]{0}', space=vmem, size = 0x1000, scoped, tag = 'input window, operand 1, single buffered']
    #allocation6 [shape = 's32[1]{0}', space=sflag, size = 0x4, scoped, tag = 'scoped memory for tpu_custom_call.1']
    #allocation7 [shape = 'u8[512]{0}', space=vmem, size = 0x400, scoped, tag = 'input window, operand 4, single buffered']
    #allocation8 [shape = 'u8[32768]{0}', space=vmem, size = 0x8000, scoped, tag = 'input window, operand 5, single buffered']
    #allocation9 [shape = 's32[1]{0}', space=sflag, size = 0x4, scoped, tag = 'scoped memory for tpu_custom_call.1']
    #allocation10 [shape = 'u8[512]{0}', space=vmem, size = 0x400, scoped, tag = 'input window, operand 6, single buffered']
    #allocation11 [shape = 'u8[131072]{0}', space=vmem, size = 0x20000, scoped, tag = 'input window, operand 9, single buffered']
    #allocation12 [shape = 's32[1]{0}', space=sflag, size = 0x4, scoped, tag = 'scoped memory for tpu_custom_call.1']
    #allocation13 [shape = 'u8[4096]{0}', space=vmem, size = 0x1000, scoped, tag = 'output window, operand 0, single buffered']
    %20 = vsyncpa [#allocation3], 0
    %21 = vsyncpa [#allocation6], 0
    %22 = vsyncpa [#allocation9], 0
    %23 = vsyncpa [#allocation12], 0
    %24 = vsyncpa [#allocation4], 0
    // Predicated region
    $region2: #{tpu_custom_call.1} parent=1 // pred_check
      _
    $region3: #{tpu_custom_call.1} parent=1 // pred_check_branch
      %26 = sbr.rel (0) target = $region5
    $region4: #{tpu_custom_call.1} parent=1 // pred_region
      %s28 = ssub.s32 128, 128
      %29 = vsyncadd [#allocation3], %s28
      %s31 = sshll.u32 [#allocation2], 4
      %s32 = int_to_ptr.vmem [resolvable:$true] %s31
      %34 = dma.hbm_to_vmem [thread:$0]  %s0, 128, %s32, [#allocation3]
    $region5: #{tpu_custom_call.1} parent=1 // pred_fallthru
      _
    // Predicated region
    $region6: #{tpu_custom_call.1} parent=1 // pred_check
      _
    $region7: #{tpu_custom_call.1} parent=1 // pred_check_branch
      %36 = sbr.rel (0) target = $region9
    $region8: #{tpu_custom_call.1} parent=1 // pred_region
      %s38 = ssub.s32 128, 128
      %39 = vsyncadd [#allocation6], %s38
      %s41 = sshll.u32 [#allocation5], 4
      %s42 = int_to_ptr.vmem [resolvable:$true] %s41
      %44 = dma.hbm_to_vmem [thread:$0]  %s1, 128, %s42, [#allocation6]
    $region9: #{tpu_custom_call.1} parent=1 // pred_fallthru
      _
    // Predicated region
    $region10: #{tpu_custom_call.1} parent=1 // pred_check
      _
    $region11: #{tpu_custom_call.1} parent=1 // pred_check_branch
      %46 = sbr.rel (0) target = $region13
    $region12: #{tpu_custom_call.1} parent=1 // pred_region
      _
    $region13: #{tpu_custom_call.1} parent=1 // pred_fallthru
      _
    // Predicated region
    $region14: #{tpu_custom_call.1} parent=1 // pred_check
      _
    $region15: #{tpu_custom_call.1} parent=1 // pred_check_branch
      %48 = sbr.rel (0) target = $region17
    $region16: #{tpu_custom_call.1} parent=1 // pred_region
      _
    $region17: #{tpu_custom_call.1} parent=1 // pred_fallthru
      _
    // Predicated region
    $region18: #{tpu_custom_call.1} parent=1 // pred_check
      _
    $region19: #{tpu_custom_call.1} parent=1 // pred_check_branch
      %50 = sbr.rel (0) target = $region21
    $region20: #{tpu_custom_call.1} parent=1 // pred_region
      %s52 = ssub.s32 16, 16
      %53 = vsyncadd [#allocation6], %s52
      %s55 = sshll.u32 [#allocation7], 4
      %s56 = int_to_ptr.vmem [resolvable:$true] %s55
      %58 = dma.hbm_to_vmem [thread:$0]  %s4, 16, %s56, [#allocation6]
    $region21: #{tpu_custom_call.1} parent=1 // pred_fallthru
      _
    // Predicated region
    $region22: #{tpu_custom_call.1} parent=1 // pred_check
      _
    $region23: #{tpu_custom_call.1} parent=1 // pred_check_branch
      %60 = sbr.rel (0) target = $region25
    $region24: #{tpu_custom_call.1} parent=1 // pred_region
      %s62 = ssub.s32 1024, 1024
      %63 = vsyncadd [#allocation9], %s62
      %s64 = sshll.u32 [#allocation8], 4
      %s65 = int_to_ptr.vmem [resolvable:$true] %s64
      %70 = dma.hbm_to_vmem [thread:$0]  %s5, 1024, %s65, [#allocation9], 128, 128, 8
    $region25: #{tpu_custom_call.1} parent=1 // pred_fallthru
      _
    // Predicated region
    $region26: #{tpu_custom_call.1} parent=1 // pred_check
      _
    $region27: #{tpu_custom_call.1} parent=1 // pred_check_branch
      %72 = sbr.rel (0) target = $region29
    $region28: #{tpu_custom_call.1} parent=1 // pred_region
      %s74 = ssub.s32 16, 16
      %75 = vsyncadd [#allocation9], %s74
      %s77 = sshll.u32 [#allocation10], 4
      %s78 = int_to_ptr.vmem [resolvable:$true] %s77
      %80 = dma.hbm_to_vmem [thread:$0]  %s6, 16, %s78, [#allocation9]
    $region29: #{tpu_custom_call.1} parent=1 // pred_fallthru
      _
    // Predicated region
    $region30: #{tpu_custom_call.1} parent=1 // pred_check
      _
    $region31: #{tpu_custom_call.1} parent=1 // pred_check_branch
      %82 = sbr.rel (0) target = $region33
    $region32: #{tpu_custom_call.1} parent=1 // pred_region
      _
    $region33: #{tpu_custom_call.1} parent=1 // pred_fallthru
      _
    // Predicated region
    $region34: #{tpu_custom_call.1} parent=1 // pred_check
      _
    $region35: #{tpu_custom_call.1} parent=1 // pred_check_branch
      %84 = sbr.rel (0) target = $region37
    $region36: #{tpu_custom_call.1} parent=1 // pred_region
      _
    $region37: #{tpu_custom_call.1} parent=1 // pred_fallthru
      _
    // Predicated region
    $region38: #{tpu_custom_call.1} parent=1 // pred_check
      _
    $region39: #{tpu_custom_call.1} parent=1 // pred_check_branch
      %86 = sbr.rel (0) target = $region41
    $region40: #{tpu_custom_call.1} parent=1 // pred_region
      %s88 = ssub.s32 4096, 4096
      %89 = vsyncadd [#allocation12], %s88
      %s90 = sshll.u32 [#allocation11], 4
      %s91 = int_to_ptr.vmem [resolvable:$true] %s90
      %96 = dma.hbm_to_vmem [thread:$0]  %s9, 4096, %s91, [#allocation12], 128, 128, 8
    $region41: #{tpu_custom_call.1} parent=1 // pred_fallthru
      _
    // Predicated region
    $region42: #{tpu_custom_call.1} parent=1 // pred_check
      _
    $region43: #{tpu_custom_call.1} parent=1 // pred_check_branch
      %98 = sbr.rel (0) target = $region45
    $region44: #{tpu_custom_call.1} parent=1 // pred_region
      _
    $region45: #{tpu_custom_call.1} parent=1 // pred_fallthru
      _
    // Predicated region
    $region46: #{tpu_custom_call.1} parent=1 // pred_check
      _
    $region47: #{tpu_custom_call.1} parent=1 // pred_check_branch
      %100 = sbr.rel (0) target = $region49
    $region48: #{tpu_custom_call.1} parent=1 // pred_region
      _
    $region49: #{tpu_custom_call.1} parent=1 // pred_fallthru
      _
    // Predicated region
    $region50: #{tpu_custom_call.1} parent=1 // pred_check
      _
    $region51: #{tpu_custom_call.1} parent=1 // pred_check_branch
      %102 = sbr.rel (0) target = $region53
    $region52: #{tpu_custom_call.1} parent=1 // pred_region
      _
    $region53: #{tpu_custom_call.1} parent=1 // pred_fallthru
      _
    // Predicated region
    $region54: #{tpu_custom_call.1} parent=1 // pred_check
      _
    $region55: #{tpu_custom_call.1} parent=1 // pred_check_branch
      %104 = sbr.rel (0) target = $region57
    $region56: #{tpu_custom_call.1} parent=1 // pred_region
      _
    $region57: #{tpu_custom_call.1} parent=1 // pred_fallthru
      _
    // Predicated region
    $region58: #{tpu_custom_call.1} parent=1 // pred_check
      _
    $region59: #{tpu_custom_call.1} parent=1 // pred_check_branch
      %106 = sbr.rel (0) target = $region61
    $region60: #{tpu_custom_call.1} parent=1 // pred_region
      _
    $region61: #{tpu_custom_call.1} parent=1 // pred_fallthru
      _
    // Predicated region
    $region62: #{tpu_custom_call.1} parent=1 // pred_check
      _
    $region63: #{tpu_custom_call.1} parent=1 // pred_check_branch
      %108 = sbr.rel (0) target = $region65
    $region64: #{tpu_custom_call.1} parent=1 // pred_region
      %109 = dma.done [#allocation3], 128
    $region65: #{tpu_custom_call.1} parent=1 // pred_fallthru
      _
    // Predicated region
    $region66: #{tpu_custom_call.1} parent=1 // pred_check
      _
    $region67: #{tpu_custom_call.1} parent=1 // pred_check_branch
      %111 = sbr.rel (0) target = $region69
    $region68: #{tpu_custom_call.1} parent=1 // pred_region
      %112 = dma.done [#allocation6], 128
    $region69: #{tpu_custom_call.1} parent=1 // pred_fallthru
      _
    // Predicated region
    $region70: #{tpu_custom_call.1} parent=1 // pred_check
      _
    $region71: #{tpu_custom_call.1} parent=1 // pred_check_branch
      %114 = sbr.rel (0) target = $region73
    $region72: #{tpu_custom_call.1} parent=1 // pred_region
      %115 = dma.done [#allocation6], 16
    $region73: #{tpu_custom_call.1} parent=1 // pred_fallthru
      _
    // Predicated region
    $region74: #{tpu_custom_call.1} parent=1 // pred_check
      _
    $region75: #{tpu_custom_call.1} parent=1 // pred_check_branch
      %117 = sbr.rel (0) target = $region77
    $region76: #{tpu_custom_call.1} parent=1 // pred_region
      %118 = dma.done [#allocation9], 1024
    $region77: #{tpu_custom_call.1} parent=1 // pred_fallthru
      _
    // Predicated region
    $region78: #{tpu_custom_call.1} parent=1 // pred_check
      _
    $region79: #{tpu_custom_call.1} parent=1 // pred_check_branch
      %120 = sbr.rel (0) target = $region81
    $region80: #{tpu_custom_call.1} parent=1 // pred_region
      %121 = dma.done [#allocation9], 16
    $region81: #{tpu_custom_call.1} parent=1 // pred_fallthru
      _
    // Predicated region
    $region82: #{tpu_custom_call.1} parent=1 // pred_check
      _
    $region83: #{tpu_custom_call.1} parent=1 // pred_check_branch
      %123 = sbr.rel (0) target = $region85
    $region84: #{tpu_custom_call.1} parent=1 // pred_region
      %124 = dma.done [#allocation12], 4096
    $region85: #{tpu_custom_call.1} parent=1 // pred_fallthru
      _
    %v125 = vld [vmem:[%s2] sm:$0xff]
    %v126 = vld [vmem:[%s2 + $0x8] sm:$0xff]
    %v127 = vld [vmem:[%s3] sm:$0xff]
    %v128 = vld [vmem:[%s3 + $0x8] sm:$0xff]
    %v129 = vld [vmem:[#allocation2] sm:$0xff]
    %v130 = vld [vmem:[#allocation5] sm:$0xff]
    %vm131 = vcmask 130048
    %v133 = vsel %vm131, %v130, 0
    %135 = vmatprep.subr.mxu0 0.0
    %136 = vmatpush1.msra.mxu0 %v127
    %137 = vmatprep.subr.mxu0 0.0
    %138 = vmatpush1.msra.mxu0 %v128
    %139 = vmatprep.subr.mxu0 0.0
    %140 = vmatpush1.msra.mxu0 0.0
    %141 = vmatprep.subr.mxu0 0.0
    %142 = vmatpush1.msra.mxu0 0.0
    %143 = vmatprep.subr.mxu0 0.0
    %144 = vmatpush1.msra.mxu0 0.0
    %145 = vmatprep.subr.mxu0 0.0
    %146 = vmatpush1.msra.mxu0 0.0
    %147 = vmatprep.subr.mxu0 0.0
    %148 = vmatpush1.msra.mxu0 0.0
    %149 = vmatprep.subr.mxu0 0.0
    %150 = vmatpush1.msra.mxu0 0.0
    %151 = vmatprep.subr.mxu0 0.0
    %152 = vmatpush1.msra.mxu0 0.0
    %153 = vmatprep.subr.mxu0 0.0
    %154 = vmatpush1.msra.mxu0 0.0
    %155 = vmatprep.subr.mxu0 0.0
    %156 = vmatpush1.msra.mxu0 0.0
    %157 = vmatprep.subr.mxu0 0.0
    %158 = vmatpush1.msra.mxu0 0.0
    %159 = vmatprep.subr.mxu0 0.0
    %160 = vmatpush1.msra.mxu0 0.0
    %161 = vmatprep.subr.mxu0 0.0
    %162 = vmatpush1.msra.mxu0 0.0
    %163 = vmatprep.subr.mxu0 0.0
    %164 = vmatpush1.msra.mxu0 0.0
    %165 = vmatprep.subr.mxu0 0.0
    %166 = vmatpush1.msra.mxu0 0.0
    %167 = vmatprep.subr.mxu0 0.0
    %168 = vmatpush1.msra.mxu0 0.0
    %169 = vmatprep.subr.mxu0 0.0
    %170 = vmatpush1.msra.mxu0 0.0
    %171 = vmatprep.subr.mxu0 0.0
    %172 = vmatpush1.msra.mxu0 0.0
    %173 = vmatprep.subr.mxu0 0.0
    %174 = vmatpush1.msra.mxu0 0.0
    %175 = vmatprep.subr.mxu0 0.0
    %176 = vmatpush1.msra.mxu0 0.0
    %177 = vmatprep.subr.mxu0 0.0
    %178 = vmatpush1.msra.mxu0 0.0
    %179 = vmatprep.subr.mxu0 0.0
    %180 = vmatpush1.msra.mxu0 0.0
    %181 = vmatprep.subr.mxu0 0.0
    %182 = vmatpush1.msra.mxu0 0.0
    %183 = vmatprep.subr.mxu0 0.0
    %184 = vmatpush1.msra.mxu0 0.0
    %185 = vmatprep.subr.mxu0 0.0
    %186 = vmatpush1.msra.mxu0 0.0
    %187 = vmatprep.subr.mxu0 0.0
    %188 = vmatpush1.msra.mxu0 0.0
    %189 = vmatprep.subr.mxu0 0.0
    %190 = vmatpush1.msra.mxu0 0.0
    %191 = vmatprep.subr.mxu0 0.0
    %192 = vmatpush1.msra.mxu0 0.0
    %193 = vmatprep.subr.mxu0 0.0
    %194 = vmatpush1.msra.mxu0 0.0
    %195 = vmatprep.subr.mxu0 0.0
    %196 = vmatpush1.msra.mxu0 0.0
    %197 = vmatprep.subr.mxu0 0.0
    %198 = vmatpush1.msra.mxu0 0.0
    %199 = vmatprep.mubr.f32.mxu0 0.0
    %200 = vmatmul.mubr.f32.gmra.mrb[0].mxu0 %v133
    %v201 = vpop.f32.mrb[0].mxu0
    %v202 = vadd.f32 0.0, %v201
    %v203 = vpop.f32.mrb[0].mxu0
    %204 = vdwg.mxu0
    %v206 = vsel %vm131, %v129, 0
    %208 = vmatprep.subr.mxu0 0.0
    %209 = vmatpush1.msra.mxu0 %v125
    %210 = vmatprep.subr.mxu0 0.0
    %211 = vmatpush1.msra.mxu0 %v126
    %212 = vmatprep.subr.mxu0 0.0
    %213 = vmatpush1.msra.mxu0 0.0
    %214 = vmatprep.subr.mxu0 0.0
    %215 = vmatpush1.msra.mxu0 0.0
    %216 = vmatprep.subr.mxu0 0.0
    %217 = vmatpush1.msra.mxu0 0.0
    %218 = vmatprep.subr.mxu0 0.0
    %219 = vmatpush1.msra.mxu0 0.0
    %220 = vmatprep.subr.mxu0 0.0
    %221 = vmatpush1.msra.mxu0 0.0
    %222 = vmatprep.subr.mxu0 0.0
    %223 = vmatpush1.msra.mxu0 0.0
    %224 = vmatprep.subr.mxu0 0.0
    %225 = vmatpush1.msra.mxu0 0.0
    %226 = vmatprep.subr.mxu0 0.0
    %227 = vmatpush1.msra.mxu0 0.0
    %228 = vmatprep.subr.mxu0 0.0
    %229 = vmatpush1.msra.mxu0 0.0
    %230 = vmatprep.subr.mxu0 0.0
    %231 = vmatpush1.msra.mxu0 0.0
    %232 = vmatprep.subr.mxu0 0.0
    %233 = vmatpush1.msra.mxu0 0.0
    %234 = vmatprep.subr.mxu0 0.0
    %235 = vmatpush1.msra.mxu0 0.0
    %236 = vmatprep.subr.mxu0 0.0
    %237 = vmatpush1.msra.mxu0 0.0
    %238 = vmatprep.subr.mxu0 0.0
    %239 = vmatpush1.msra.mxu0 0.0
    %240 = vmatprep.subr.mxu0 0.0
    %241 = vmatpush1.msra.mxu0 0.0
    %242 = vmatprep.subr.mxu0 0.0
    %243 = vmatpush1.msra.mxu0 0.0
    %244 = vmatprep.subr.mxu0 0.0
    %245 = vmatpush1.msra.mxu0 0.0
    %246 = vmatprep.subr.mxu0 0.0
    %247 = vmatpush1.msra.mxu0 0.0
    %248 = vmatprep.subr.mxu0 0.0
    %249 = vmatpush1.msra.mxu0 0.0
    %250 = vmatprep.subr.mxu0 0.0
    %251 = vmatpush1.msra.mxu0 0.0
    %252 = vmatprep.subr.mxu0 0.0
    %253 = vmatpush1.msra.mxu0 0.0
    %254 = vmatprep.subr.mxu0 0.0
    %255 = vmatpush1.msra.mxu0 0.0
    %256 = vmatprep.subr.mxu0 0.0
    %257 = vmatpush1.msra.mxu0 0.0
    %258 = vmatprep.subr.mxu0 0.0
    %259 = vmatpush1.msra.mxu0 0.0
    %260 = vmatprep.subr.mxu0 0.0
    %261 = vmatpush1.msra.mxu0 0.0
    %262 = vmatprep.subr.mxu0 0.0
    %263 = vmatpush1.msra.mxu0 0.0
    %264 = vmatprep.subr.mxu0 0.0
    %265 = vmatpush1.msra.mxu0 0.0
    %266 = vmatprep.subr.mxu0 0.0
    %267 = vmatpush1.msra.mxu0 0.0
    %268 = vmatprep.subr.mxu0 0.0
    %269 = vmatpush1.msra.mxu0 0.0
    %270 = vmatprep.subr.mxu0 0.0
    %271 = vmatpush1.msra.mxu0 0.0
    %272 = vmatprep.mubr.f32.mxu0 0.0
    %273 = vmatmul.mubr.f32.gmra.mrb[0].mxu0 %v206
    %v274 = vpop.f32.mrb[0].mxu0
    %v275 = vadd.f32 %v202, %v274
    %v276 = vpop.f32.mrb[0].mxu0
    %277 = vdwg.mxu0
    %v278 = vld [vmem:[#allocation7] sm:$0x1]
    %v280 = vlaneseq
    %v281 = vshrl.u32 %v280, 7
    %v282 = vsub.s32 0, %v281
    %v283 = vrot.slane %v278, %v282
    %v285 = vadd.f32 %v275, %v283
    %v286 = vmax.f32 %v285, 0.0
    %v287 = vld [vmem:[#allocation8] sm:$0xff]
    %v288 = vld [vmem:[#allocation8 + $0x8] sm:$0xff]
    %v289 = vld [vmem:[#allocation8 + $0x10] sm:$0xff]
    %v290 = vld [vmem:[#allocation8 + $0x18] sm:$0xff]
    %v291 = vld [vmem:[#allocation8 + $0x20] sm:$0xff]
    %v292 = vld [vmem:[#allocation8 + $0x28] sm:$0xff]
    %v293 = vld [vmem:[#allocation8 + $0x30] sm:$0xff]
    %v294 = vld [vmem:[#allocation8 + $0x38] sm:$0xff]
    %v295 = vld [vmem:[#allocation10] sm:$0x1]
    %v297 = vlaneseq
    %v298 = vshrl.u32 %v297, 7
    %v299 = vsub.s32 0, %v298
    %v300 = vrot.slane %v295, %v299
    %vm302 = vcmask 523264
    %v304 = vsel %vm302, %v286, 0
    %306 = vmatprep.subr.mxu0 0.0
    %307 = vmatpush1.msra.mxu0 %v287
    %308 = vmatprep.subr.mxu0 0.0
    %309 = vmatpush1.msra.mxu0 %v288
    %310 = vmatprep.subr.mxu0 0.0
    %311 = vmatpush1.msra.mxu0 %v289
    %312 = vmatprep.subr.mxu0 0.0
    %313 = vmatpush1.msra.mxu0 %v290
    %314 = vmatprep.subr.mxu0 0.0
    %315 = vmatpush1.msra.mxu0 %v291
    %316 = vmatprep.subr.mxu0 0.0
    %317 = vmatpush1.msra.mxu0 %v292
    %318 = vmatprep.subr.mxu0 0.0
    %319 = vmatpush1.msra.mxu0 %v293
    %320 = vmatprep.subr.mxu0 0.0
    %321 = vmatpush1.msra.mxu0 %v294
    %322 = vmatprep.subr.mxu0 0.0
    %323 = vmatpush1.msra.mxu0 0.0
    %324 = vmatprep.subr.mxu0 0.0
    %325 = vmatpush1.msra.mxu0 0.0
    %326 = vmatprep.subr.mxu0 0.0
    %327 = vmatpush1.msra.mxu0 0.0
    %328 = vmatprep.subr.mxu0 0.0
    %329 = vmatpush1.msra.mxu0 0.0
    %330 = vmatprep.subr.mxu0 0.0
    %331 = vmatpush1.msra.mxu0 0.0
    %332 = vmatprep.subr.mxu0 0.0
    %333 = vmatpush1.msra.mxu0 0.0
    %334 = vmatprep.subr.mxu0 0.0
    %335 = vmatpush1.msra.mxu0 0.0
    %336 = vmatprep.subr.mxu0 0.0
    %337 = vmatpush1.msra.mxu0 0.0
    %338 = vmatprep.subr.mxu0 0.0
    %339 = vmatpush1.msra.mxu0 0.0
    %340 = vmatprep.subr.mxu0 0.0
    %341 = vmatpush1.msra.mxu0 0.0
    %342 = vmatprep.subr.mxu0 0.0
    %343 = vmatpush1.msra.mxu0 0.0
    %344 = vmatprep.subr.mxu0 0.0
    %345 = vmatpush1.msra.mxu0 0.0
    %346 = vmatprep.subr.mxu0 0.0
    %347 = vmatpush1.msra.mxu0 0.0
    %348 = vmatprep.subr.mxu0 0.0
    %349 = vmatpush1.msra.mxu0 0.0
    %350 = vmatprep.subr.mxu0 0.0
    %351 = vmatpush1.msra.mxu0 0.0
    %352 = vmatprep.subr.mxu0 0.0
    %353 = vmatpush1.msra.mxu0 0.0
    %354 = vmatprep.subr.mxu0 0.0
    %355 = vmatpush1.msra.mxu0 0.0
    %356 = vmatprep.subr.mxu0 0.0
    %357 = vmatpush1.msra.mxu0 0.0
    %358 = vmatprep.subr.mxu0 0.0
    %359 = vmatpush1.msra.mxu0 0.0
    %360 = vmatprep.subr.mxu0 0.0
    %361 = vmatpush1.msra.mxu0 0.0
    %362 = vmatprep.subr.mxu0 0.0
    %363 = vmatpush1.msra.mxu0 0.0
    %364 = vmatprep.subr.mxu0 0.0
    %365 = vmatpush1.msra.mxu0 0.0
    %366 = vmatprep.subr.mxu0 0.0
    %367 = vmatpush1.msra.mxu0 0.0
    %368 = vmatprep.subr.mxu0 0.0
    %369 = vmatpush1.msra.mxu0 0.0
    %370 = vmatprep.mubr.f32.mxu0 0.0
    %371 = vmatmul.mubr.f32.gmra.mrb[0].mxu0 %v304
    %v372 = vpop.f32.mrb[0].mxu0
    %v373 = vadd.f32 %v300, %v372
    %v374 = vpop.f32.mrb[0].mxu0
    %375 = vdwg.mxu0
    %v376 = vmax.f32 %v373, 0.0
    %v377 = vld [vmem:[%s7] sm:$0xff]
    %v378 = vld [vmem:[%s7 + $0x8] sm:$0xff]
    %v379 = vld [vmem:[%s7 + $0x10] sm:$0xff]
    %v380 = vld [vmem:[%s7 + $0x18] sm:$0xff]
    %v381 = vld [vmem:[%s7 + $0x20] sm:$0xff]
    %v382 = vld [vmem:[%s7 + $0x28] sm:$0xff]
    %v383 = vld [vmem:[%s7 + $0x30] sm:$0xff]
    %v384 = vld [vmem:[%s7 + $0x38] sm:$0xff]
    %v385 = vld [vmem:[%s7 + $0x40] sm:$0xff]
    %v386 = vld [vmem:[%s7 + $0x48] sm:$0xff]
    %v387 = vld [vmem:[%s7 + $0x50] sm:$0xff]
    %v388 = vld [vmem:[%s7 + $0x58] sm:$0xff]
    %v389 = vld [vmem:[%s7 + $0x60] sm:$0xff]
    %v390 = vld [vmem:[%s7 + $0x68] sm:$0xff]
    %v391 = vld [vmem:[%s7 + $0x70] sm:$0xff]
    %v392 = vld [vmem:[%s7 + $0x78] sm:$0xff]
    %v393 = vld [vmem:[%s7 + $0x80] sm:$0xff]
    %v394 = vld [vmem:[%s7 + $0x88] sm:$0xff]
    %v395 = vld [vmem:[%s7 + $0x90] sm:$0xff]
    %v396 = vld [vmem:[%s7 + $0x98] sm:$0xff]
    %v397 = vld [vmem:[%s7 + $0xa0] sm:$0xff]
    %v398 = vld [vmem:[%s7 + $0xa8] sm:$0xff]
    %v399 = vld [vmem:[%s7 + $0xb0] sm:$0xff]
    %v400 = vld [vmem:[%s7 + $0xb8] sm:$0xff]
    %v401 = vld [vmem:[%s7 + $0xc0] sm:$0xff]
    %v402 = vld [vmem:[%s7 + $0xc8] sm:$0xff]
    %v403 = vld [vmem:[%s7 + $0xd0] sm:$0xff]
    %v404 = vld [vmem:[%s7 + $0xd8] sm:$0xff]
    %v405 = vld [vmem:[%s7 + $0xe0] sm:$0xff]
    %v406 = vld [vmem:[%s7 + $0xe8] sm:$0xff]
    %v407 = vld [vmem:[%s7 + $0xf0] sm:$0xff]
    %v408 = vld [vmem:[%s7 + $0xf8] sm:$0xff]
    %v409 = vld [vmem:[%s8] sm:$0x3]
    %v411 = vlaneseq
    %v412 = vshrl.u32 %v411, 7
    %v413 = vsub.s32 0, %v412
    %v414 = vrot.slane %v409, %v413
    %v415 = vlaneseq
    %v416 = vshrl.u32 %v415, 7
    %v417 = vsub.s32 1, %v416
    %v418 = vrot.slane %v409, %v417
    %421 = vmatprep.subr.mxu0 %v378
    %422 = vmatpush1.msra.mxu0 %v377
    %423 = vmatprep.subr.mxu0 %v380
    %424 = vmatpush1.msra.mxu0 %v379
    %425 = vmatprep.subr.mxu0 %v382
    %426 = vmatpush1.msra.mxu0 %v381
    %427 = vmatprep.subr.mxu0 %v384
    %428 = vmatpush1.msra.mxu0 %v383
    %429 = vmatprep.subr.mxu0 %v386
    %430 = vmatpush1.msra.mxu0 %v385
    %431 = vmatprep.subr.mxu0 %v388
    %432 = vmatpush1.msra.mxu0 %v387
    %433 = vmatprep.subr.mxu0 %v390
    %434 = vmatpush1.msra.mxu0 %v389
    %435 = vmatprep.subr.mxu0 %v392
    %436 = vmatpush1.msra.mxu0 %v391
    %437 = vmatprep.subr.mxu0 %v394
    %438 = vmatpush1.msra.mxu0 %v393
    %439 = vmatprep.subr.mxu0 %v396
    %440 = vmatpush1.msra.mxu0 %v395
    %441 = vmatprep.subr.mxu0 %v398
    %442 = vmatpush1.msra.mxu0 %v397
    %443 = vmatprep.subr.mxu0 %v400
    %444 = vmatpush1.msra.mxu0 %v399
    %445 = vmatprep.subr.mxu0 %v402
    %446 = vmatpush1.msra.mxu0 %v401
    %447 = vmatprep.subr.mxu0 %v404
    %448 = vmatpush1.msra.mxu0 %v403
    %449 = vmatprep.subr.mxu0 %v406
    %450 = vmatpush1.msra.mxu0 %v405
    %451 = vmatprep.subr.mxu0 %v408
    %452 = vmatpush1.msra.mxu0 %v407
    %453 = vmatprep.subr.mxu0 0.0
    %454 = vmatpush1.msra.mxu0 0.0
    %455 = vmatprep.subr.mxu0 0.0
    %456 = vmatpush1.msra.mxu0 0.0
    %457 = vmatprep.subr.mxu0 0.0
    %458 = vmatpush1.msra.mxu0 0.0
    %459 = vmatprep.subr.mxu0 0.0
    %460 = vmatpush1.msra.mxu0 0.0
    %461 = vmatprep.subr.mxu0 0.0
    %462 = vmatpush1.msra.mxu0 0.0
    %463 = vmatprep.subr.mxu0 0.0
    %464 = vmatpush1.msra.mxu0 0.0
    %465 = vmatprep.subr.mxu0 0.0
    %466 = vmatpush1.msra.mxu0 0.0
    %467 = vmatprep.subr.mxu0 0.0
    %468 = vmatpush1.msra.mxu0 0.0
    %469 = vmatprep.subr.mxu0 0.0
    %470 = vmatpush1.msra.mxu0 0.0
    %471 = vmatprep.subr.mxu0 0.0
    %472 = vmatpush1.msra.mxu0 0.0
    %473 = vmatprep.subr.mxu0 0.0
    %474 = vmatpush1.msra.mxu0 0.0
    %475 = vmatprep.subr.mxu0 0.0
    %476 = vmatpush1.msra.mxu0 0.0
    %477 = vmatprep.subr.mxu0 0.0
    %478 = vmatpush1.msra.mxu0 0.0
    %479 = vmatprep.subr.mxu0 0.0
    %480 = vmatpush1.msra.mxu0 0.0
    %481 = vmatprep.subr.mxu0 0.0
    %482 = vmatpush1.msra.mxu0 0.0
    %483 = vmatprep.subr.mxu0 0.0
    %484 = vmatpush1.msra.mxu0 0.0
    %485 = vmatprep.mubr.f32.mxu0 0.0
    %486 = vmatmul.mubr.f32.gmra.mrb[0].mxu0 %v376
    %v487 = vpop.f32.mrb[0].mxu0
    %v488 = vadd.f32 %v414, %v487
    %v489 = vpop.f32.mrb[0].mxu0
    %v490 = vadd.f32 %v418, %v489
    %491 = vdwg.mxu0
    %v492 = vmax.f32 %v488, 0.0
    %v493 = vmax.f32 %v490, 0.0
    %v494 = vld [vmem:[#allocation11] sm:$0xff]
    %v495 = vld [vmem:[#allocation11 + $0x8] sm:$0xff]
    %v496 = vld [vmem:[#allocation11 + $0x10] sm:$0xff]
    %v497 = vld [vmem:[#allocation11 + $0x18] sm:$0xff]
    %v498 = vld [vmem:[#allocation11 + $0x20] sm:$0xff]
    %v499 = vld [vmem:[#allocation11 + $0x28] sm:$0xff]
    %v500 = vld [vmem:[#allocation11 + $0x30] sm:$0xff]
    %v501 = vld [vmem:[#allocation11 + $0x38] sm:$0xff]
    %v502 = vld [vmem:[#allocation11 + $0x40] sm:$0xff]
    %v503 = vld [vmem:[#allocation11 + $0x48] sm:$0xff]
    %v504 = vld [vmem:[#allocation11 + $0x50] sm:$0xff]
    %v505 = vld [vmem:[#allocation11 + $0x58] sm:$0xff]
    %v506 = vld [vmem:[#allocation11 + $0x60] sm:$0xff]
    %v507 = vld [vmem:[#allocation11 + $0x68] sm:$0xff]
    %v508 = vld [vmem:[#allocation11 + $0x70] sm:$0xff]
    %v509 = vld [vmem:[#allocation11 + $0x78] sm:$0xff]
    %v510 = vld [vmem:[#allocation11 + $0x80] sm:$0xff]
    %v511 = vld [vmem:[#allocation11 + $0x88] sm:$0xff]
    %v512 = vld [vmem:[#allocation11 + $0x90] sm:$0xff]
    %v513 = vld [vmem:[#allocation11 + $0x98] sm:$0xff]
    %v514 = vld [vmem:[#allocation11 + $0xa0] sm:$0xff]
    %v515 = vld [vmem:[#allocation11 + $0xa8] sm:$0xff]
    %v516 = vld [vmem:[#allocation11 + $0xb0] sm:$0xff]
    %v517 = vld [vmem:[#allocation11 + $0xb8] sm:$0xff]
    %v518 = vld [vmem:[#allocation11 + $0xc0] sm:$0xff]
    %v519 = vld [vmem:[#allocation11 + $0xc8] sm:$0xff]
    %v520 = vld [vmem:[#allocation11 + $0xd0] sm:$0xff]
    %v521 = vld [vmem:[#allocation11 + $0xd8] sm:$0xff]
    %v522 = vld [vmem:[#allocation11 + $0xe0] sm:$0xff]
    %v523 = vld [vmem:[#allocation11 + $0xe8] sm:$0xff]
    %v524 = vld [vmem:[#allocation11 + $0xf0] sm:$0xff]
    %v525 = vld [vmem:[#allocation11 + $0xf8] sm:$0xff]
    %v526 = vld [vmem:[%s10] sm:$0x1]
    %v528 = vlaneseq
    %v529 = vshrl.u32 %v528, 7
    %v530 = vsub.s32 0, %v529
    %v531 = vrot.slane %v526, %v530
    %533 = vmatprep.subr.mxu0 0.0
    %534 = vmatpush1.msra.mxu0 %v494
    %535 = vmatprep.subr.mxu0 0.0
    %536 = vmatpush1.msra.mxu0 %v495
    %537 = vmatprep.subr.mxu0 0.0
    %538 = vmatpush1.msra.mxu0 %v496
    %539 = vmatprep.subr.mxu0 0.0
    %540 = vmatpush1.msra.mxu0 %v497
    %541 = vmatprep.subr.mxu0 0.0
    %542 = vmatpush1.msra.mxu0 %v498
    %543 = vmatprep.subr.mxu0 0.0
    %544 = vmatpush1.msra.mxu0 %v499
    %545 = vmatprep.subr.mxu0 0.0
    %546 = vmatpush1.msra.mxu0 %v500
    %547 = vmatprep.subr.mxu0 0.0
    %548 = vmatpush1.msra.mxu0 %v501
    %549 = vmatprep.subr.mxu0 0.0
    %550 = vmatpush1.msra.mxu0 %v502
    %551 = vmatprep.subr.mxu0 0.0
    %552 = vmatpush1.msra.mxu0 %v503
    %553 = vmatprep.subr.mxu0 0.0
    %554 = vmatpush1.msra.mxu0 %v504
    %555 = vmatprep.subr.mxu0 0.0
    %556 = vmatpush1.msra.mxu0 %v505
    %557 = vmatprep.subr.mxu0 0.0
    %558 = vmatpush1.msra.mxu0 %v506
    %559 = vmatprep.subr.mxu0 0.0
    %560 = vmatpush1.msra.mxu0 %v507
    %561 = vmatprep.subr.mxu0 0.0
    %562 = vmatpush1.msra.mxu0 %v508
    %563 = vmatprep.subr.mxu0 0.0
    %564 = vmatpush1.msra.mxu0 %v509
    %565 = vmatprep.subr.mxu0 0.0
    %566 = vmatpush1.msra.mxu0 %v510
    %567 = vmatprep.subr.mxu0 0.0
    %568 = vmatpush1.msra.mxu0 %v511
    %569 = vmatprep.subr.mxu0 0.0
    %570 = vmatpush1.msra.mxu0 %v512
    %571 = vmatprep.subr.mxu0 0.0
    %572 = vmatpush1.msra.mxu0 %v513
    %573 = vmatprep.subr.mxu0 0.0
    %574 = vmatpush1.msra.mxu0 %v514
    %575 = vmatprep.subr.mxu0 0.0
    %576 = vmatpush1.msra.mxu0 %v515
    %577 = vmatprep.subr.mxu0 0.0
    %578 = vmatpush1.msra.mxu0 %v516
    %579 = vmatprep.subr.mxu0 0.0
    %580 = vmatpush1.msra.mxu0 %v517
    %581 = vmatprep.subr.mxu0 0.0
    %582 = vmatpush1.msra.mxu0 %v518
    %583 = vmatprep.subr.mxu0 0.0
    %584 = vmatpush1.msra.mxu0 %v519
    %585 = vmatprep.subr.mxu0 0.0
    %586 = vmatpush1.msra.mxu0 %v520
    %587 = vmatprep.subr.mxu0 0.0
    %588 = vmatpush1.msra.mxu0 %v521
    %589 = vmatprep.subr.mxu0 0.0
    %590 = vmatpush1.msra.mxu0 %v522
    %591 = vmatprep.subr.mxu0 0.0
    %592 = vmatpush1.msra.mxu0 %v523
    %593 = vmatprep.subr.mxu0 0.0
    %594 = vmatpush1.msra.mxu0 %v524
    %595 = vmatprep.subr.mxu0 0.0
    %596 = vmatpush1.msra.mxu0 %v525
    %597 = vmatprep.mubr.f32.mxu0 %v493
    %598 = vmatmul.mubr.f32.gmra.mrb[0].mxu0 %v492
    %v599 = vpop.f32.mrb[0].mxu0
    %v600 = vadd.f32 %v531, %v599
    %v601 = vpop.f32.mrb[0].mxu0
    %602 = vdwg.mxu0
    %v603 = vmax.f32 %v600, 0.0
    %v604 = vld [vmem:[%s11] sm:$0xff]
    %v605 = vld [vmem:[%s11 + $0x8] sm:$0xff]
    %v606 = vld [vmem:[%s11 + $0x10] sm:$0xff]
    %v607 = vld [vmem:[%s11 + $0x18] sm:$0xff]
    %v608 = vld [vmem:[%s11 + $0x20] sm:$0xff]
    %v609 = vld [vmem:[%s11 + $0x28] sm:$0xff]
    %v610 = vld [vmem:[%s11 + $0x30] sm:$0xff]
    %v611 = vld [vmem:[%s11 + $0x38] sm:$0xff]
    %v612 = vld [vmem:[%s11 + $0x40] sm:$0xff]
    %v613 = vld [vmem:[%s11 + $0x48] sm:$0xff]
    %v614 = vld [vmem:[%s11 + $0x50] sm:$0xff]
    %v615 = vld [vmem:[%s11 + $0x58] sm:$0xff]
    %v616 = vld [vmem:[%s11 + $0x60] sm:$0xff]
    %v617 = vld [vmem:[%s11 + $0x68] sm:$0xff]
    %v618 = vld [vmem:[%s11 + $0x70] sm:$0xff]
    %v619 = vld [vmem:[%s11 + $0x78] sm:$0xff]
    %v620 = vld [vmem:[%s12] sm:$0x1]
    %v622 = vlaneseq
    %v623 = vshrl.u32 %v622, 7
    %v624 = vsub.s32 0, %v623
    %v625 = vrot.slane %v620, %v624
    %627 = vmatprep.subr.mxu0 0.0
    %628 = vmatpush1.msra.mxu0 %v604
    %629 = vmatprep.subr.mxu0 0.0
    %630 = vmatpush1.msra.mxu0 %v605
    %631 = vmatprep.subr.mxu0 0.0
    %632 = vmatpush1.msra.mxu0 %v606
    %633 = vmatprep.subr.mxu0 0.0
    %634 = vmatpush1.msra.mxu0 %v607
    %635 = vmatprep.subr.mxu0 0.0
    %636 = vmatpush1.msra.mxu0 %v608
    %637 = vmatprep.subr.mxu0 0.0
    %638 = vmatpush1.msra.mxu0 %v609
    %639 = vmatprep.subr.mxu0 0.0
    %640 = vmatpush1.msra.mxu0 %v610
    %641 = vmatprep.subr.mxu0 0.0
    %642 = vmatpush1.msra.mxu0 %v611
    %643 = vmatprep.subr.mxu0 0.0
    %644 = vmatpush1.msra.mxu0 %v612
    %645 = vmatprep.subr.mxu0 0.0
    %646 = vmatpush1.msra.mxu0 %v613
    %647 = vmatprep.subr.mxu0 0.0
    %648 = vmatpush1.msra.mxu0 %v614
    %649 = vmatprep.subr.mxu0 0.0
    %650 = vmatpush1.msra.mxu0 %v615
    %651 = vmatprep.subr.mxu0 0.0
    %652 = vmatpush1.msra.mxu0 %v616
    %653 = vmatprep.subr.mxu0 0.0
    %654 = vmatpush1.msra.mxu0 %v617
    %655 = vmatprep.subr.mxu0 0.0
    %656 = vmatpush1.msra.mxu0 %v618
    %657 = vmatprep.subr.mxu0 0.0
    %658 = vmatpush1.msra.mxu0 %v619
    %659 = vmatprep.subr.mxu0 0.0
    %660 = vmatpush1.msra.mxu0 0.0
    %661 = vmatprep.subr.mxu0 0.0
    %662 = vmatpush1.msra.mxu0 0.0
    %663 = vmatprep.subr.mxu0 0.0
    %664 = vmatpush1.msra.mxu0 0.0
    %665 = vmatprep.subr.mxu0 0.0
    %666 = vmatpush1.msra.mxu0 0.0
    %667 = vmatprep.subr.mxu0 0.0
    %668 = vmatpush1.msra.mxu0 0.0
    %669 = vmatprep.subr.mxu0 0.0
    %670 = vmatpush1.msra.mxu0 0.0
    %671 = vmatprep.subr.mxu0 0.0
    %672 = vmatpush1.msra.mxu0 0.0
    %673 = vmatprep.subr.mxu0 0.0
    %674 = vmatpush1.msra.mxu0 0.0
    %675 = vmatprep.subr.mxu0 0.0
    %676 = vmatpush1.msra.mxu0 0.0
    %677 = vmatprep.subr.mxu0 0.0
    %678 = vmatpush1.msra.mxu0 0.0
    %679 = vmatprep.subr.mxu0 0.0
    %680 = vmatpush1.msra.mxu0 0.0
    %681 = vmatprep.subr.mxu0 0.0
    %682 = vmatpush1.msra.mxu0 0.0
    %683 = vmatprep.subr.mxu0 0.0
    %684 = vmatpush1.msra.mxu0 0.0
    %685 = vmatprep.subr.mxu0 0.0
    %686 = vmatpush1.msra.mxu0 0.0
    %687 = vmatprep.subr.mxu0 0.0
    %688 = vmatpush1.msra.mxu0 0.0
    %689 = vmatprep.subr.mxu0 0.0
    %690 = vmatpush1.msra.mxu0 0.0
    %691 = vmatprep.mubr.f32.mxu0 0.0
    %692 = vmatmul.mubr.f32.gmra.mrb[0].mxu0 %v603
    %v693 = vpop.f32.mrb[0].mxu0
    %v694 = vadd.f32 %v625, %v693
    %v695 = vpop.f32.mrb[0].mxu0
    %696 = vdwg.mxu0
    %v697 = vmax.f32 %v694, 0.0
    %v698 = vld [vmem:[%s13] sm:$0xff]
    %v699 = vld [vmem:[%s13 + $0x8] sm:$0xff]
    %v700 = vld [vmem:[%s13 + $0x10] sm:$0xff]
    %v701 = vld [vmem:[%s13 + $0x18] sm:$0xff]
    %v702 = vld [vmem:[%s13 + $0x20] sm:$0xff]
    %v703 = vld [vmem:[%s13 + $0x28] sm:$0xff]
    %v704 = vld [vmem:[%s13 + $0x30] sm:$0xff]
    %v705 = vld [vmem:[%s13 + $0x38] sm:$0xff]
    %v706 = vld [vmem:[%s14] sm:$0x1]
    %v708 = vlaneseq
    %v709 = vshrl.u32 %v708, 7
    %v710 = vsub.s32 0, %v709
    %v711 = vrot.slane %v706, %v710
    %v714 = vsel %vm302, %v697, 0
    %716 = vmatprep.subr.mxu0 0.0
    %717 = vmatpush1.msra.mxu0 %v698
    %718 = vmatprep.subr.mxu0 0.0
    %719 = vmatpush1.msra.mxu0 %v699
    %720 = vmatprep.subr.mxu0 0.0
    %721 = vmatpush1.msra.mxu0 %v700
    %722 = vmatprep.subr.mxu0 0.0
    %723 = vmatpush1.msra.mxu0 %v701
    %724 = vmatprep.subr.mxu0 0.0
    %725 = vmatpush1.msra.mxu0 %v702
    %726 = vmatprep.subr.mxu0 0.0
    %727 = vmatpush1.msra.mxu0 %v703
    %728 = vmatprep.subr.mxu0 0.0
    %729 = vmatpush1.msra.mxu0 %v704
    %730 = vmatprep.subr.mxu0 0.0
    %731 = vmatpush1.msra.mxu0 %v705
    %732 = vmatprep.subr.mxu0 0.0
    %733 = vmatpush1.msra.mxu0 0.0
    %734 = vmatprep.subr.mxu0 0.0
    %735 = vmatpush1.msra.mxu0 0.0
    %736 = vmatprep.subr.mxu0 0.0
    %737 = vmatpush1.msra.mxu0 0.0
    %738 = vmatprep.subr.mxu0 0.0
    %739 = vmatpush1.msra.mxu0 0.0
    %740 = vmatprep.subr.mxu0 0.0
    %741 = vmatpush1.msra.mxu0 0.0
    %742 = vmatprep.subr.mxu0 0.0
    %743 = vmatpush1.msra.mxu0 0.0
    %744 = vmatprep.subr.mxu0 0.0
    %745 = vmatpush1.msra.mxu0 0.0
    %746 = vmatprep.subr.mxu0 0.0
    %747 = vmatpush1.msra.mxu0 0.0
    %748 = vmatprep.subr.mxu0 0.0
    %749 = vmatpush1.msra.mxu0 0.0
    %750 = vmatprep.subr.mxu0 0.0
    %751 = vmatpush1.msra.mxu0 0.0
    %752 = vmatprep.subr.mxu0 0.0
    %753 = vmatpush1.msra.mxu0 0.0
    %754 = vmatprep.subr.mxu0 0.0
    %755 = vmatpush1.msra.mxu0 0.0
    %756 = vmatprep.subr.mxu0 0.0
    %757 = vmatpush1.msra.mxu0 0.0
    %758 = vmatprep.subr.mxu0 0.0
    %759 = vmatpush1.msra.mxu0 0.0
    %760 = vmatprep.subr.mxu0 0.0
    %761 = vmatpush1.msra.mxu0 0.0
    %762 = vmatprep.subr.mxu0 0.0
    %763 = vmatpush1.msra.mxu0 0.0
    %764 = vmatprep.subr.mxu0 0.0
    %765 = vmatpush1.msra.mxu0 0.0
    %766 = vmatprep.subr.mxu0 0.0
    %767 = vmatpush1.msra.mxu0 0.0
    %768 = vmatprep.subr.mxu0 0.0
    %769 = vmatpush1.msra.mxu0 0.0
    %770 = vmatprep.subr.mxu0 0.0
    %771 = vmatpush1.msra.mxu0 0.0
    %772 = vmatprep.subr.mxu0 0.0
    %773 = vmatpush1.msra.mxu0 0.0
    %774 = vmatprep.subr.mxu0 0.0
    %775 = vmatpush1.msra.mxu0 0.0
    %776 = vmatprep.subr.mxu0 0.0
    %777 = vmatpush1.msra.mxu0 0.0
    %778 = vmatprep.subr.mxu0 0.0
    %779 = vmatpush1.msra.mxu0 0.0
    %780 = vmatprep.mubr.f32.mxu0 0.0
    %781 = vmatmul.mubr.f32.gmra.mrb[0].mxu0 %v714
    %v782 = vpop.f32.mrb[0].mxu0
    %v783 = vadd.f32 %v711, %v782
    %v784 = vpop.f32.mrb[0].mxu0
    %785 = vdwg.mxu0
    %vm786 = vcmask 64512
    %787 = vst.msk [vmem:[#allocation13] sm:$0xff] %vm786, %v783
    // Predicated region
    $region86: #{tpu_custom_call.1} parent=1 // pred_check
      _
    $region87: #{tpu_custom_call.1} parent=1 // pred_check_branch
      %789 = sbr.rel (0) target = $region89
    $region88: #{tpu_custom_call.1} parent=1 // pred_region
      %s791 = ssub.s32 128, 128
      %792 = vsyncadd [#allocation4], %s791
      %s794 = sshll.u32 [#allocation13], 4
      %s795 = int_to_ptr.vmem [resolvable:$true] %s794
      %797 = dma.vmem_to_hbm [thread:$0]  %s795, 128, %s15, [#allocation4]
    $region89: #{tpu_custom_call.1} parent=1 // pred_fallthru
      _
    // Predicated region
    $region90: #{tpu_custom_call.1} parent=1 // pred_check
      _
    $region91: #{tpu_custom_call.1} parent=1 // pred_check_branch
      %799 = sbr.rel (0) target = $region93
    $region92: #{tpu_custom_call.1} parent=1 // pred_region
      %800 = dma.done [#allocation4], 128
    $region93: #{tpu_custom_call.1} parent=1 // pred_fallthru
      _
    %801 = vsyncpa [#allocation3], 1
    %802 = vsyncpa [#allocation6], 1
    %803 = vsyncpa [#allocation9], 1
    %804 = vsyncpa [#allocation12], 1
    %805 = vsyncpa [#allocation4], 1

</llo_original>
